<compile_context>
chip_gen: v5e
topology: v5e:2x2
jax: 0.10.0
libtpu: 0.0.40
codegen_flags: <defaults>
</compile_context>

<pallas_src>
import numpy as np
import jax
import jax.numpy as jnp
from jax import lax
from jax.experimental import pallas as pl
from jax.experimental.pallas import tpu as pltpu


# ---------------------------------------------------------------------------
# Pallas kernel: 3x3 conv with in-kernel im2col (9 offset slices of a flat
# padded row-slab), 3-pass bf16 MXU dots, f32 accumulation.
# ---------------------------------------------------------------------------
def _make_conv_kernel(cp, n, wp):
    def kernel(w_hi_ref, w_lo_ref, p_ref, o_ref):
        # w_hi_ref/w_lo_ref : (9, Cp, Cin) bf16 tap matrices, resident in VMEM
        # p_ref             : (1, 1, Cin, Lp) f32 flat padded row-slab
        # o_ref             : (1, 1, Cp, N)  N = TH*Wp
        p = p_ref[0, 0]                                          # (Cin, Lp) f32
        # hi/lo bf16 split of the activations (done once per grid step in VMEM)
        p_hi = p.astype(jnp.bfloat16)
        p_lo = (p - p_hi.astype(jnp.float32)).astype(jnp.bfloat16)

        acc = jnp.zeros((cp, n), jnp.float32)
        for t in range(9):                                       # static unroll
            dh, dw = divmod(t, 3)
            s = dh * wp + dw                                     # flat tap offset
            ph = p_hi[:, s:s + n]                                # (Cin, N)
            plo = p_lo[:, s:s + n]
            w_hi = w_hi_ref[t]                                   # (Cp, Cin)
            w_lo = w_lo_ref[t]
            # 3 single-pass bf16 MXU dots ~= f32 (bf16_3x), half of HIGHEST.
            acc += jnp.dot(w_hi, ph, preferred_element_type=jnp.float32)
            acc += jnp.dot(w_hi, plo, preferred_element_type=jnp.float32)
            acc += jnp.dot(w_lo, ph, preferred_element_type=jnp.float32)
        o_ref[0, 0] = acc
    return kernel


def conv3x3_pallas(x_nchw, w4):
    """Conv2d(Cin, Cout, kernel_size=3, padding=1, bias=False) on NCHW input."""
    b, cin, h, w = x_nchw.shape
    cout = w4.shape[0]
    wp = w + 2
    cp = max(8, ((cout + 7) // 8) * 8)            # sublane-padded Cout

    # Row-tile TH derived from a VMEM pipeline budget (double-buffered in/out,
    # f32), capped at H.  For the test shape this gives a single H tile.
    budget = 24 * 1024 * 1024                     # headroom under v7x's 64 MiB
    bytes_per_row = 8 * wp * (cin + cp)           # 2 bufs * 4 B * Wp * (Cin+Cp)
    th = int(max(1, min(h, budget // bytes_per_row)))
    if b == 1 and h >= 2:
        th = min(th, pl.cdiv(h, 2))               # >=2 grid steps for v7x's 2 TCs
    h_tiles = pl.cdiv(h, th)
    hr = h_tiles * th
    lp = (th + 3) * wp                            # flat slab length per tile
    n = th * wp                                   # flat output length per tile

    xf = x_nchw.astype(jnp.float32)
    # Zero-pad: conv halo (1 each side) + rows to round H up to hr + one spare
    # row so the flat tap-offset slices never run off the end of a slab.
    xp = jnp.pad(xf, ((0, 0), (0, 0), (1, hr - h + 2), (1, 1)))  # (B,Cin,hr+3,Wp)
    if h_tiles == 1:
        slabs = xp.reshape(b, 1, cin, lp)                        # free reshape
    else:
        slabs = jnp.stack([xp[:, :, i * th:i * th + th + 3, :]
                           for i in range(h_tiles)], axis=1)
        slabs = slabs.reshape(b, h_tiles, cin, lp)               # 3-row halo dup

    # Tap matrices (9, Cp, Cin), Cout padded, pre-split into bf16 hi/lo.
    w_taps = jnp.transpose(w4.astype(jnp.float32), (2, 3, 0, 1)).reshape(9, cout, cin)
    if cp != cout:
        w_taps = jnp.pad(w_taps, ((0, 0), (0, cp - cout), (0, 0)))
    w_hi = w_taps.astype(jnp.bfloat16)
    w_lo = (w_taps - w_hi.astype(jnp.float32)).astype(jnp.bfloat16)

    block_bytes = 4 * 2 * (cin * lp + cp * n) + 2 * 2 * 9 * cp * cin
    vmem_limit = int(min(40 * 1024 * 1024, max(16 * 1024 * 1024, 4 * block_bytes)))

    out = pl.pallas_call(
        _make_conv_kernel(cp, n, wp),
        out_shape=jax.ShapeDtypeStruct((b, h_tiles, cp, n), jnp.float32),
        grid_spec=pltpu.PrefetchScalarGridSpec(
            num_scalar_prefetch=0,
            grid=(b, h_tiles),
            in_specs=[
                pl.BlockSpec((9, cp, cin), lambda bb, ii: (0, 0, 0)),      # resident
                pl.BlockSpec((9, cp, cin), lambda bb, ii: (0, 0, 0)),      # resident
                pl.BlockSpec((1, 1, cin, lp), lambda bb, ii: (bb, ii, 0, 0)),
            ],
            out_specs=pl.BlockSpec((1, 1, cp, n), lambda bb, ii: (bb, ii, 0, 0)),
        ),
        compiler_params=pltpu.CompilerParams(
            dimension_semantics=("parallel", "parallel"),   # shards across v7x TCs
            vmem_limit_bytes=vmem_limit,
            # NOTE: on v6e, pipeline_mode=pl.Buffered(3) on the slab spec is an
            # option if DMA is still exposed after enlarging TH.
        ),
        cost_estimate=pl.CostEstimate(
            flops=2 * b * h_tiles * 9 * cp * cin * n,
            transcendentals=0,
            bytes_accessed=4 * b * h_tiles * (cin * lp + cp * n)
                           + 2 * 2 * 9 * cp * cin),
    )(w_hi, w_lo, slabs)

    # NCHW restore: metadata-only when h_tiles == 1 (no full-output HBM
    # transpose); the only real copy is the pad-dropping slice.
    out = out.reshape(b, h_tiles, cp, th, wp)
    out = jnp.transpose(out, (0, 2, 1, 3, 4)).reshape(b, cp, hr, wp)
    return out[:, :cout, :h, :w]


# ---------------------------------------------------------------------------
# Tiny row-restricted conv (rows 0 and H-1 only) — plain jnp on purpose:
# a pallas_call here would be pure launch overhead for 2 output rows, and XLA
# fuses it directly with the row-correction arithmetic.
# ---------------------------------------------------------------------------
def _conv3x3_boundary_rows(x, w4):
    """Rows 0 and H-1 of Conv2d(x, w4, padding=1) -> ((B,Cout,W), (B,Cout,W))."""
    b, c, h, w = x.shape
    xf = x.astype(jnp.float32)
    xw = jnp.pad(xf, ((0, 0), (0, 0), (0, 0), (1, 1)))            # pad W only
    zrow = jnp.zeros((b, c, 1, w + 2), jnp.float32)
    win0 = jnp.concatenate([zrow, xw[:, :, 0:2, :]], axis=2)      # rows [-1(pad),0,1]
    winN = jnp.concatenate([xw[:, :, h - 2:h, :], zrow], axis=2)  # rows [H-2,H-1,H(pad)]
    wf = w4.astype(jnp.float32)

    def one_row(win):
        cols = jnp.stack([win[:, :, :, dw:dw + w] for dw in range(3)], axis=3)
        return jnp.einsum("oikl,bikls->bos", wf, cols,
                          precision=lax.Precision.HIGHEST)
    return one_row(win0), one_row(winN)


# ---------------------------------------------------------------------------
# gaussian_elim_layer2d.gauss_elimination  (module.forward raises
# NotImplementedError, so gauss_elimination is the implemented forward pass).
# ---------------------------------------------------------------------------
def gauss_elimination(x, w4, *, tol=1e-4, left=True, right=True):
    x = x.astype(jnp.float32)
    b, c, h, w = x.shape

    # Boundary kernels: only channel 0 / rows {0, -1} of layer(e1), layer(eN)
    # are used -> row-restricted conv on batch-1 probes (conv is batch-indep).
    e1 = jnp.zeros((1, c, h, w), jnp.float32).at[:, :, 0, :].set(1.0)
    eN = jnp.zeros((1, c, h, w), jnp.float32).at[:, :, -1, :].set(1.0)
    Ke1_0, Ke1_N = _conv3x3_boundary_rows(e1, w4)
    KeN_0, KeN_N = _conv3x3_boundary_rows(eN, w4)
    K00, KN0 = Ke1_0[0, 0, :], Ke1_N[0, 0, :]
    K0N, KNN = KeN_0[0, 0, :], KeN_N[0, 0, :]
    # torch.nonzero(K < tol)-based in-place clamp == elementwise where-clamp.
    K00 = jnp.where(K00 < tol, tol, K00)
    KNN = jnp.where(KNN < tol, tol, KNN)
    inv_KNN = 1.0 / KNN

    if left:
        # Only rows 0 and -1 of Kx = layer(x) are used.
        Kx0, KxN = _conv3x3_boundary_rows(x, w4)
        tilde_K00 = K00 - KN0 * K0N * inv_KNN
        tilde_K00 = jnp.where(tilde_K00 < tol, tol, tilde_K00)
        new_row0 = (2.0 * x[:, :, 0, :]
                    - (1.0 / tilde_K00) * (Kx0 - KxN * K0N * inv_KNN
                                           + K0N * x[:, :, -1, :]))
        T2_left_x = x.at[:, :, 0, :].set(new_row0)
    else:
        T2_left_x = x

    if right:
        # Only row -1 of Ky = layer(T2_left_x) is used.
        _, KyN = _conv3x3_boundary_rows(T2_left_x, w4)
        # NOTE: faithful to the PyTorch code, which reads row 0 of T2_right_y
        # (== row 0 of T2_left_x) here.
        new_rowN = 2.0 * T2_left_x[:, :, 0, :] - KyN * inv_KNN
        T2_right_y = T2_left_x.at[:, :, -1, :].set(new_rowN)
    else:
        T2_right_y = T2_left_x

    # The only conv whose full output is needed: one Pallas MXU conv.
    return conv3x3_pallas(T2_right_y, w4)


# ---------------------------------------------------------------------------
# Un-pruned reference (literal transcription, 5 full lax.conv's) — for the
# correctness check only.
# ---------------------------------------------------------------------------
def _conv3x3_ref(x, w4):
    return lax.conv_general_dilated(
        x.astype(jnp.float32), w4.astype(jnp.float32),
        window_strides=(1, 1), padding=((1, 1), (1, 1)),
        dimension_numbers=("NCHW", "OIHW", "NCHW"),
        precision=lax.Precision.HIGHEST)


def gauss_elimination_ref(x, w4, *, tol=1e-4, left=True, right=True):
    x = x.astype(jnp.float32)
    conv = lambda t: _conv3x3_ref(t, w4)
    e1 = jnp.zeros_like(x).at[:, :, 0, :].set(1.0)
    eN = jnp.zeros_like(x).at[:, :, -1, :].set(1.0)
    Ke1, KeN = conv(e1), conv(eN)
    K00, KN0 = Ke1[0, 0, 0, :], Ke1[0, 0, -1, :]
    K0N, KNN = KeN[0, 0, 0, :], KeN[0, 0, -1, :]
    K00 = jnp.where(K00 < tol, tol, K00)
    KNN = jnp.where(KNN < tol, tol, KNN)
    if left:
        Kx = conv(x)
        tilde_K00 = K00 - KN0 * K0N / KNN
        tilde_K00 = jnp.where(tilde_K00 < tol, tol, tilde_K00)
        new0 = (2.0 * x[:, :, 0, :]
                - (1.0 / tilde_K00) * (Kx[:, :, 0, :]
                                       - Kx[:, :, -1, :] * K0N / KNN
                                       + K0N * x[:, :, -1, :]))
        T2 = x.at[:, :, 0, :].set(new0)
    else:
        T2 = x
    Ky = conv(T2)
    if right:
        newN = 2.0 * T2[:, :, 0, :] - Ky[:, :, -1, :] / KNN
        T2 = T2.at[:, :, -1, :].set(newN)
    return conv(T2)


# ---------------------------------------------------------------------------
if __name__ == "__main__":
    key = jax.random.PRNGKey(0)
    kw_, kx_ = jax.random.split(key)
    B, C, H, W = 2, 4, 16, 16

    # Deterministic `layer` params: Conv2d(C, C, 3, padding=1, bias=False);
    # small random taps + identity-ish center so K00/KNN are well conditioned.
    w4 = 0.1 * jax.random.normal(kw_, (C, C, 3, 3), dtype=jnp.float32)
    w4 = w4.at[jnp.arange(C), jnp.arange(C), 1, 1].add(1.0)

    x = jax.random.normal(kx_, (B, C, H, W), dtype=jnp.float32)

    run = jax.jit(lambda xx, ww: gauss_elimination(xx, ww, tol=1e-4,
                                                   left=True, right=True))
    T = jax.block_until_ready(run(x, w4))

    T_ref = jax.block_until_ready(
        gauss_elimination_ref(x, w4, tol=1e-4, left=True, right=True))
    np.testing.assert_allclose(np.asarray(T), np.asarray(T_ref),
                               rtol=1e-4, atol=1e-4)

    print("KERNEL_OK")
</pallas_src>

<mosaic_0001>
module attributes {stable_mosaic.version = 11 : i64} {
  func.func @kernel(%arg0: i32, %arg1: i32, %arg2: memref<9x8x4xbf16, #tpu.memory_space<vmem>>, %arg3: memref<9x8x4xbf16, #tpu.memory_space<vmem>>, %arg4: memref<1x1x4x342xf32, #tpu.memory_space<vmem>>, %arg5: memref<1x1x8x288xf32, #tpu.memory_space<vmem>>) attributes {dimension_semantics = [#tpu.dimension_semantics<parallel>, #tpu.dimension_semantics<parallel>], iteration_bounds = array<i64: 2, 1>, scalar_prefetch = 0 : i64, scratch_operands = 0 : i64, tpu.core_type = #tpu.core_type<tc>, window_params = [{pipeline_mode = #tpu.pipeline_mode<synchronous>, transform_indices = @transform_0, window_bounds = array<i64: 9, 8, 4>}, {pipeline_mode = #tpu.pipeline_mode<synchronous>, transform_indices = @transform_1, window_bounds = array<i64: 9, 8, 4>}, {transform_indices = @transform_2, window_bounds = array<i64: 1, 1, 4, 342>}, {transform_indices = @transform_3, window_bounds = array<i64: 1, 1, 8, 288>}]} {
    %c0 = arith.constant 0 : index
    %c0_0 = arith.constant 0 : index
    %c0_1 = arith.constant 0 : index
    %c0_2 = arith.constant 0 : index
    %0 = vector.load %arg4[%c0, %c0_0, %c0_1, %c0_2] : memref<1x1x4x342xf32, #tpu.memory_space<vmem>>, vector<1x1x4x342xf32>
    %1 = vector.shape_cast %0 : vector<1x1x4x342xf32> to vector<4x342xf32>
    %2 = arith.truncf %1 : vector<4x342xf32> to vector<4x342xbf16>
    %3 = arith.extf %2 : vector<4x342xbf16> to vector<4x342xf32>
    %4 = arith.subf %1, %3 : vector<4x342xf32>
    %5 = arith.truncf %4 : vector<4x342xf32> to vector<4x342xbf16>
    %cst = arith.constant 0.000000e+00 : f32
    %6 = vector.broadcast %cst : f32 to vector<8x288xf32>
    %7 = vector.extract_strided_slice %2 {offsets = [0, 0], sizes = [4, 288], strides = [1, 1]} : vector<4x342xbf16> to vector<4x288xbf16>
    %8 = vector.extract_strided_slice %5 {offsets = [0, 0], sizes = [4, 288], strides = [1, 1]} : vector<4x342xbf16> to vector<4x288xbf16>
    %c0_3 = arith.constant 0 : index
    %c0_4 = arith.constant 0 : index
    %c0_5 = arith.constant 0 : index
    %9 = vector.load %arg2[%c0_3, %c0_4, %c0_5] : memref<9x8x4xbf16, #tpu.memory_space<vmem>>, vector<1x8x4xbf16>
    %10 = vector.shape_cast %9 : vector<1x8x4xbf16> to vector<8x4xbf16>
    %c0_6 = arith.constant 0 : index
    %c0_7 = arith.constant 0 : index
    %c0_8 = arith.constant 0 : index
    %11 = vector.load %arg3[%c0_6, %c0_7, %c0_8] : memref<9x8x4xbf16, #tpu.memory_space<vmem>>, vector<1x8x4xbf16>
    %12 = vector.shape_cast %11 : vector<1x8x4xbf16> to vector<8x4xbf16>
    %cst_9 = arith.constant dense<0.000000e+00> : vector<8x288xf32>
    %13 = tpu.matmul %10, %7, %cst_9 {dimension_numbers = #tpu.dot_dimension_numbers<[1], [0], [0], [1], [0, 0, 1, 1], [], []>} : vector<8x4xbf16>, vector<4x288xbf16>, vector<8x288xf32> -> vector<8x288xf32>
    %14 = arith.addf %6, %13 : vector<8x288xf32>
    %cst_10 = arith.constant dense<0.000000e+00> : vector<8x288xf32>
    %15 = tpu.matmul %10, %8, %cst_10 {dimension_numbers = #tpu.dot_dimension_numbers<[1], [0], [0], [1], [0, 0, 1, 1], [], []>} : vector<8x4xbf16>, vector<4x288xbf16>, vector<8x288xf32> -> vector<8x288xf32>
    %16 = arith.addf %14, %15 : vector<8x288xf32>
    %cst_11 = arith.constant dense<0.000000e+00> : vector<8x288xf32>
    %17 = tpu.matmul %12, %7, %cst_11 {dimension_numbers = #tpu.dot_dimension_numbers<[1], [0], [0], [1], [0, 0, 1, 1], [], []>} : vector<8x4xbf16>, vector<4x288xbf16>, vector<8x288xf32> -> vector<8x288xf32>
    %18 = arith.addf %16, %17 : vector<8x288xf32>
    %19 = vector.extract_strided_slice %2 {offsets = [0, 1], sizes = [4, 288], strides = [1, 1]} : vector<4x342xbf16> to vector<4x288xbf16>
    %20 = vector.extract_strided_slice %5 {offsets = [0, 1], sizes = [4, 288], strides = [1, 1]} : vector<4x342xbf16> to vector<4x288xbf16>
    %c1 = arith.constant 1 : index
    %c0_12 = arith.constant 0 : index
    %c0_13 = arith.constant 0 : index
    %21 = vector.load %arg2[%c1, %c0_12, %c0_13] : memref<9x8x4xbf16, #tpu.memory_space<vmem>>, vector<1x8x4xbf16>
    %22 = vector.shape_cast %21 : vector<1x8x4xbf16> to vector<8x4xbf16>
    %c1_14 = arith.constant 1 : index
    %c0_15 = arith.constant 0 : index
    %c0_16 = arith.constant 0 : index
    %23 = vector.load %arg3[%c1_14, %c0_15, %c0_16] : memref<9x8x4xbf16, #tpu.memory_space<vmem>>, vector<1x8x4xbf16>
    %24 = vector.shape_cast %23 : vector<1x8x4xbf16> to vector<8x4xbf16>
    %cst_17 = arith.constant dense<0.000000e+00> : vector<8x288xf32>
    %25 = tpu.matmul %22, %19, %cst_17 {dimension_numbers = #tpu.dot_dimension_numbers<[1], [0], [0], [1], [0, 0, 1, 1], [], []>} : vector<8x4xbf16>, vector<4x288xbf16>, vector<8x288xf32> -> vector<8x288xf32>
    %26 = arith.addf %18, %25 : vector<8x288xf32>
    %cst_18 = arith.constant dense<0.000000e+00> : vector<8x288xf32>
    %27 = tpu.matmul %22, %20, %cst_18 {dimension_numbers = #tpu.dot_dimension_numbers<[1], [0], [0], [1], [0, 0, 1, 1], [], []>} : vector<8x4xbf16>, vector<4x288xbf16>, vector<8x288xf32> -> vector<8x288xf32>
    %28 = arith.addf %26, %27 : vector<8x288xf32>
    %cst_19 = arith.constant dense<0.000000e+00> : vector<8x288xf32>
    %29 = tpu.matmul %24, %19, %cst_19 {dimension_numbers = #tpu.dot_dimension_numbers<[1], [0], [0], [1], [0, 0, 1, 1], [], []>} : vector<8x4xbf16>, vector<4x288xbf16>, vector<8x288xf32> -> vector<8x288xf32>
    %30 = arith.addf %28, %29 : vector<8x288xf32>
    %31 = vector.extract_strided_slice %2 {offsets = [0, 2], sizes = [4, 288], strides = [1, 1]} : vector<4x342xbf16> to vector<4x288xbf16>
    %32 = vector.extract_strided_slice %5 {offsets = [0, 2], sizes = [4, 288], strides = [1, 1]} : vector<4x342xbf16> to vector<4x288xbf16>
    %c2 = arith.constant 2 : index
    %c0_20 = arith.constant 0 : index
    %c0_21 = arith.constant 0 : index
    %33 = vector.load %arg2[%c2, %c0_20, %c0_21] : memref<9x8x4xbf16, #tpu.memory_space<vmem>>, vector<1x8x4xbf16>
    %34 = vector.shape_cast %33 : vector<1x8x4xbf16> to vector<8x4xbf16>
    %c2_22 = arith.constant 2 : index
    %c0_23 = arith.constant 0 : index
    %c0_24 = arith.constant 0 : index
    %35 = vector.load %arg3[%c2_22, %c0_23, %c0_24] : memref<9x8x4xbf16, #tpu.memory_space<vmem>>, vector<1x8x4xbf16>
    %36 = vector.shape_cast %35 : vector<1x8x4xbf16> to vector<8x4xbf16>
    %cst_25 = arith.constant dense<0.000000e+00> : vector<8x288xf32>
    %37 = tpu.matmul %34, %31, %cst_25 {dimension_numbers = #tpu.dot_dimension_numbers<[1], [0], [0], [1], [0, 0, 1, 1], [], []>} : vector<8x4xbf16>, vector<4x288xbf16>, vector<8x288xf32> -> vector<8x288xf32>
    %38 = arith.addf %30, %37 : vector<8x288xf32>
    %cst_26 = arith.constant dense<0.000000e+00> : vector<8x288xf32>
    %39 = tpu.matmul %34, %32, %cst_26 {dimension_numbers = #tpu.dot_dimension_numbers<[1], [0], [0], [1], [0, 0, 1, 1], [], []>} : vector<8x4xbf16>, vector<4x288xbf16>, vector<8x288xf32> -> vector<8x288xf32>
    %40 = arith.addf %38, %39 : vector<8x288xf32>
    %cst_27 = arith.constant dense<0.000000e+00> : vector<8x288xf32>
    %41 = tpu.matmul %36, %31, %cst_27 {dimension_numbers = #tpu.dot_dimension_numbers<[1], [0], [0], [1], [0, 0, 1, 1], [], []>} : vector<8x4xbf16>, vector<4x288xbf16>, vector<8x288xf32> -> vector<8x288xf32>
    %42 = arith.addf %40, %41 : vector<8x288xf32>
    %43 = vector.extract_strided_slice %2 {offsets = [0, 18], sizes = [4, 288], strides = [1, 1]} : vector<4x342xbf16> to vector<4x288xbf16>
    %44 = vector.extract_strided_slice %5 {offsets = [0, 18], sizes = [4, 288], strides = [1, 1]} : vector<4x342xbf16> to vector<4x288xbf16>
    %c3 = arith.constant 3 : index
    %c0_28 = arith.constant 0 : index
    %c0_29 = arith.constant 0 : index
    %45 = vector.load %arg2[%c3, %c0_28, %c0_29] : memref<9x8x4xbf16, #tpu.memory_space<vmem>>, vector<1x8x4xbf16>
    %46 = vector.shape_cast %45 : vector<1x8x4xbf16> to vector<8x4xbf16>
    %c3_30 = arith.constant 3 : index
    %c0_31 = arith.constant 0 : index
    %c0_32 = arith.constant 0 : index
    %47 = vector.load %arg3[%c3_30, %c0_31, %c0_32] : memref<9x8x4xbf16, #tpu.memory_space<vmem>>, vector<1x8x4xbf16>
    %48 = vector.shape_cast %47 : vector<1x8x4xbf16> to vector<8x4xbf16>
    %cst_33 = arith.constant dense<0.000000e+00> : vector<8x288xf32>
    %49 = tpu.matmul %46, %43, %cst_33 {dimension_numbers = #tpu.dot_dimension_numbers<[1], [0], [0], [1], [0, 0, 1, 1], [], []>} : vector<8x4xbf16>, vector<4x288xbf16>, vector<8x288xf32> -> vector<8x288xf32>
    %50 = arith.addf %42, %49 : vector<8x288xf32>
    %cst_34 = arith.constant dense<0.000000e+00> : vector<8x288xf32>
    %51 = tpu.matmul %46, %44, %cst_34 {dimension_numbers = #tpu.dot_dimension_numbers<[1], [0], [0], [1], [0, 0, 1, 1], [], []>} : vector<8x4xbf16>, vector<4x288xbf16>, vector<8x288xf32> -> vector<8x288xf32>
    %52 = arith.addf %50, %51 : vector<8x288xf32>
    %cst_35 = arith.constant dense<0.000000e+00> : vector<8x288xf32>
    %53 = tpu.matmul %48, %43, %cst_35 {dimension_numbers = #tpu.dot_dimension_numbers<[1], [0], [0], [1], [0, 0, 1, 1], [], []>} : vector<8x4xbf16>, vector<4x288xbf16>, vector<8x288xf32> -> vector<8x288xf32>
    %54 = arith.addf %52, %53 : vector<8x288xf32>
    %55 = vector.extract_strided_slice %2 {offsets = [0, 19], sizes = [4, 288], strides = [1, 1]} : vector<4x342xbf16> to vector<4x288xbf16>
    %56 = vector.extract_strided_slice %5 {offsets = [0, 19], sizes = [4, 288], strides = [1, 1]} : vector<4x342xbf16> to vector<4x288xbf16>
    %c4 = arith.constant 4 : index
    %c0_36 = arith.constant 0 : index
    %c0_37 = arith.constant 0 : index
    %57 = vector.load %arg2[%c4, %c0_36, %c0_37] : memref<9x8x4xbf16, #tpu.memory_space<vmem>>, vector<1x8x4xbf16>
    %58 = vector.shape_cast %57 : vector<1x8x4xbf16> to vector<8x4xbf16>
    %c4_38 = arith.constant 4 : index
    %c0_39 = arith.constant 0 : index
    %c0_40 = arith.constant 0 : index
    %59 = vector.load %arg3[%c4_38, %c0_39, %c0_40] : memref<9x8x4xbf16, #tpu.memory_space<vmem>>, vector<1x8x4xbf16>
    %60 = vector.shape_cast %59 : vector<1x8x4xbf16> to vector<8x4xbf16>
    %cst_41 = arith.constant dense<0.000000e+00> : vector<8x288xf32>
    %61 = tpu.matmul %58, %55, %cst_41 {dimension_numbers = #tpu.dot_dimension_numbers<[1], [0], [0], [1], [0, 0, 1, 1], [], []>} : vector<8x4xbf16>, vector<4x288xbf16>, vector<8x288xf32> -> vector<8x288xf32>
    %62 = arith.addf %54, %61 : vector<8x288xf32>
    %cst_42 = arith.constant dense<0.000000e+00> : vector<8x288xf32>
    %63 = tpu.matmul %58, %56, %cst_42 {dimension_numbers = #tpu.dot_dimension_numbers<[1], [0], [0], [1], [0, 0, 1, 1], [], []>} : vector<8x4xbf16>, vector<4x288xbf16>, vector<8x288xf32> -> vector<8x288xf32>
    %64 = arith.addf %62, %63 : vector<8x288xf32>
    %cst_43 = arith.constant dense<0.000000e+00> : vector<8x288xf32>
    %65 = tpu.matmul %60, %55, %cst_43 {dimension_numbers = #tpu.dot_dimension_numbers<[1], [0], [0], [1], [0, 0, 1, 1], [], []>} : vector<8x4xbf16>, vector<4x288xbf16>, vector<8x288xf32> -> vector<8x288xf32>
    %66 = arith.addf %64, %65 : vector<8x288xf32>
    %67 = vector.extract_strided_slice %2 {offsets = [0, 20], sizes = [4, 288], strides = [1, 1]} : vector<4x342xbf16> to vector<4x288xbf16>
    %68 = vector.extract_strided_slice %5 {offsets = [0, 20], sizes = [4, 288], strides = [1, 1]} : vector<4x342xbf16> to vector<4x288xbf16>
    %c5 = arith.constant 5 : index
    %c0_44 = arith.constant 0 : index
    %c0_45 = arith.constant 0 : index
    %69 = vector.load %arg2[%c5, %c0_44, %c0_45] : memref<9x8x4xbf16, #tpu.memory_space<vmem>>, vector<1x8x4xbf16>
    %70 = vector.shape_cast %69 : vector<1x8x4xbf16> to vector<8x4xbf16>
    %c5_46 = arith.constant 5 : index
    %c0_47 = arith.constant 0 : index
    %c0_48 = arith.constant 0 : index
    %71 = vector.load %arg3[%c5_46, %c0_47, %c0_48] : memref<9x8x4xbf16, #tpu.memory_space<vmem>>, vector<1x8x4xbf16>
    %72 = vector.shape_cast %71 : vector<1x8x4xbf16> to vector<8x4xbf16>
    %cst_49 = arith.constant dense<0.000000e+00> : vector<8x288xf32>
    %73 = tpu.matmul %70, %67, %cst_49 {dimension_numbers = #tpu.dot_dimension_numbers<[1], [0], [0], [1], [0, 0, 1, 1], [], []>} : vector<8x4xbf16>, vector<4x288xbf16>, vector<8x288xf32> -> vector<8x288xf32>
    %74 = arith.addf %66, %73 : vector<8x288xf32>
    %cst_50 = arith.constant dense<0.000000e+00> : vector<8x288xf32>
    %75 = tpu.matmul %70, %68, %cst_50 {dimension_numbers = #tpu.dot_dimension_numbers<[1], [0], [0], [1], [0, 0, 1, 1], [], []>} : vector<8x4xbf16>, vector<4x288xbf16>, vector<8x288xf32> -> vector<8x288xf32>
    %76 = arith.addf %74, %75 : vector<8x288xf32>
    %cst_51 = arith.constant dense<0.000000e+00> : vector<8x288xf32>
    %77 = tpu.matmul %72, %67, %cst_51 {dimension_numbers = #tpu.dot_dimension_numbers<[1], [0], [0], [1], [0, 0, 1, 1], [], []>} : vector<8x4xbf16>, vector<4x288xbf16>, vector<8x288xf32> -> vector<8x288xf32>
    %78 = arith.addf %76, %77 : vector<8x288xf32>
    %79 = vector.extract_strided_slice %2 {offsets = [0, 36], sizes = [4, 288], strides = [1, 1]} : vector<4x342xbf16> to vector<4x288xbf16>
    %80 = vector.extract_strided_slice %5 {offsets = [0, 36], sizes = [4, 288], strides = [1, 1]} : vector<4x342xbf16> to vector<4x288xbf16>
    %c6 = arith.constant 6 : index
    %c0_52 = arith.constant 0 : index
    %c0_53 = arith.constant 0 : index
    %81 = vector.load %arg2[%c6, %c0_52, %c0_53] : memref<9x8x4xbf16, #tpu.memory_space<vmem>>, vector<1x8x4xbf16>
    %82 = vector.shape_cast %81 : vector<1x8x4xbf16> to vector<8x4xbf16>
    %c6_54 = arith.constant 6 : index
    %c0_55 = arith.constant 0 : index
    %c0_56 = arith.constant 0 : index
    %83 = vector.load %arg3[%c6_54, %c0_55, %c0_56] : memref<9x8x4xbf16, #tpu.memory_space<vmem>>, vector<1x8x4xbf16>
    %84 = vector.shape_cast %83 : vector<1x8x4xbf16> to vector<8x4xbf16>
    %cst_57 = arith.constant dense<0.000000e+00> : vector<8x288xf32>
    %85 = tpu.matmul %82, %79, %cst_57 {dimension_numbers = #tpu.dot_dimension_numbers<[1], [0], [0], [1], [0, 0, 1, 1], [], []>} : vector<8x4xbf16>, vector<4x288xbf16>, vector<8x288xf32> -> vector<8x288xf32>
    %86 = arith.addf %78, %85 : vector<8x288xf32>
    %cst_58 = arith.constant dense<0.000000e+00> : vector<8x288xf32>
    %87 = tpu.matmul %82, %80, %cst_58 {dimension_numbers = #tpu.dot_dimension_numbers<[1], [0], [0], [1], [0, 0, 1, 1], [], []>} : vector<8x4xbf16>, vector<4x288xbf16>, vector<8x288xf32> -> vector<8x288xf32>
    %88 = arith.addf %86, %87 : vector<8x288xf32>
    %cst_59 = arith.constant dense<0.000000e+00> : vector<8x288xf32>
    %89 = tpu.matmul %84, %79, %cst_59 {dimension_numbers = #tpu.dot_dimension_numbers<[1], [0], [0], [1], [0, 0, 1, 1], [], []>} : vector<8x4xbf16>, vector<4x288xbf16>, vector<8x288xf32> -> vector<8x288xf32>
    %90 = arith.addf %88, %89 : vector<8x288xf32>
    %91 = vector.extract_strided_slice %2 {offsets = [0, 37], sizes = [4, 288], strides = [1, 1]} : vector<4x342xbf16> to vector<4x288xbf16>
    %92 = vector.extract_strided_slice %5 {offsets = [0, 37], sizes = [4, 288], strides = [1, 1]} : vector<4x342xbf16> to vector<4x288xbf16>
    %c7 = arith.constant 7 : index
    %c0_60 = arith.constant 0 : index
    %c0_61 = arith.constant 0 : index
    %93 = vector.load %arg2[%c7, %c0_60, %c0_61] : memref<9x8x4xbf16, #tpu.memory_space<vmem>>, vector<1x8x4xbf16>
    %94 = vector.shape_cast %93 : vector<1x8x4xbf16> to vector<8x4xbf16>
    %c7_62 = arith.constant 7 : index
    %c0_63 = arith.constant 0 : index
    %c0_64 = arith.constant 0 : index
    %95 = vector.load %arg3[%c7_62, %c0_63, %c0_64] : memref<9x8x4xbf16, #tpu.memory_space<vmem>>, vector<1x8x4xbf16>
    %96 = vector.shape_cast %95 : vector<1x8x4xbf16> to vector<8x4xbf16>
    %cst_65 = arith.constant dense<0.000000e+00> : vector<8x288xf32>
    %97 = tpu.matmul %94, %91, %cst_65 {dimension_numbers = #tpu.dot_dimension_numbers<[1], [0], [0], [1], [0, 0, 1, 1], [], []>} : vector<8x4xbf16>, vector<4x288xbf16>, vector<8x288xf32> -> vector<8x288xf32>
    %98 = arith.addf %90, %97 : vector<8x288xf32>
    %cst_66 = arith.constant dense<0.000000e+00> : vector<8x288xf32>
    %99 = tpu.matmul %94, %92, %cst_66 {dimension_numbers = #tpu.dot_dimension_numbers<[1], [0], [0], [1], [0, 0, 1, 1], [], []>} : vector<8x4xbf16>, vector<4x288xbf16>, vector<8x288xf32> -> vector<8x288xf32>
    %100 = arith.addf %98, %99 : vector<8x288xf32>
    %cst_67 = arith.constant dense<0.000000e+00> : vector<8x288xf32>
    %101 = tpu.matmul %96, %91, %cst_67 {dimension_numbers = #tpu.dot_dimension_numbers<[1], [0], [0], [1], [0, 0, 1, 1], [], []>} : vector<8x4xbf16>, vector<4x288xbf16>, vector<8x288xf32> -> vector<8x288xf32>
    %102 = arith.addf %100, %101 : vector<8x288xf32>
    %103 = vector.extract_strided_slice %2 {offsets = [0, 38], sizes = [4, 288], strides = [1, 1]} : vector<4x342xbf16> to vector<4x288xbf16>
    %104 = vector.extract_strided_slice %5 {offsets = [0, 38], sizes = [4, 288], strides = [1, 1]} : vector<4x342xbf16> to vector<4x288xbf16>
    %c8 = arith.constant 8 : index
    %c0_68 = arith.constant 0 : index
    %c0_69 = arith.constant 0 : index
    %105 = vector.load %arg2[%c8, %c0_68, %c0_69] : memref<9x8x4xbf16, #tpu.memory_space<vmem>>, vector<1x8x4xbf16>
    %106 = vector.shape_cast %105 : vector<1x8x4xbf16> to vector<8x4xbf16>
    %c8_70 = arith.constant 8 : index
    %c0_71 = arith.constant 0 : index
    %c0_72 = arith.constant 0 : index
    %107 = vector.load %arg3[%c8_70, %c0_71, %c0_72] : memref<9x8x4xbf16, #tpu.memory_space<vmem>>, vector<1x8x4xbf16>
    %108 = vector.shape_cast %107 : vector<1x8x4xbf16> to vector<8x4xbf16>
    %cst_73 = arith.constant dense<0.000000e+00> : vector<8x288xf32>
    %109 = tpu.matmul %106, %103, %cst_73 {dimension_numbers = #tpu.dot_dimension_numbers<[1], [0], [0], [1], [0, 0, 1, 1], [], []>} : vector<8x4xbf16>, vector<4x288xbf16>, vector<8x288xf32> -> vector<8x288xf32>
    %110 = arith.addf %102, %109 : vector<8x288xf32>
    %cst_74 = arith.constant dense<0.000000e+00> : vector<8x288xf32>
    %111 = tpu.matmul %106, %104, %cst_74 {dimension_numbers = #tpu.dot_dimension_numbers<[1], [0], [0], [1], [0, 0, 1, 1], [], []>} : vector<8x4xbf16>, vector<4x288xbf16>, vector<8x288xf32> -> vector<8x288xf32>
    %112 = arith.addf %110, %111 : vector<8x288xf32>
    %cst_75 = arith.constant dense<0.000000e+00> : vector<8x288xf32>
    %113 = tpu.matmul %108, %103, %cst_75 {dimension_numbers = #tpu.dot_dimension_numbers<[1], [0], [0], [1], [0, 0, 1, 1], [], []>} : vector<8x4xbf16>, vector<4x288xbf16>, vector<8x288xf32> -> vector<8x288xf32>
    %114 = arith.addf %112, %113 : vector<8x288xf32>
    %c0_76 = arith.constant 0 : index
    %c0_77 = arith.constant 0 : index
    %c0_78 = arith.constant 0 : index
    %c0_79 = arith.constant 0 : index
    %115 = vector.load %arg5[%c0_76, %c0_77, %c0_78, %c0_79] : memref<1x1x8x288xf32, #tpu.memory_space<vmem>>, vector<1x1x8x288xf32>
    %116 = vector.shape_cast %115 : vector<1x1x8x288xf32> to vector<8x288xf32>
    %117 = vector.shape_cast %114 : vector<8x288xf32> to vector<1x1x8x288xf32>
    tpu.vector_store %arg5[%c0_76, %c0_77, %c0_78, %c0_79], %117 {strides = array<i32>} : memref<1x1x8x288xf32, #tpu.memory_space<vmem>>, vector<1x1x8x288xf32>,
    return
  }
  func.func @transform_0(%arg0: i32, %arg1: i32) -> (i32, i32, i32) {
    %c0_i32 = arith.constant 0 : i32
    %c0_i32_0 = arith.constant 0 : i32
    %c0_i32_1 = arith.constant 0 : i32
    %c0_i32_2 = arith.constant 0 : i32
    return %c0_i32, %c0_i32_0, %c0_i32_1 : i32, i32, i32
  }
  func.func @transform_1(%arg0: i32, %arg1: i32) -> (i32, i32, i32) {
    %c0_i32 = arith.constant 0 : i32
    %c0_i32_0 = arith.constant 0 : i32
    %c0_i32_1 = arith.constant 0 : i32
    %c0_i32_2 = arith.constant 0 : i32
    return %c0_i32, %c0_i32_0, %c0_i32_1 : i32, i32, i32
  }
  func.func @transform_2(%arg0: i32, %arg1: i32) -> (i32, i32, i32, i32) {
    %c0_i32 = arith.constant 0 : i32
    %c0_i32_0 = arith.constant 0 : i32
    %c0_i32_1 = arith.constant 0 : i32
    return %arg0, %arg1, %c0_i32, %c0_i32_0 : i32, i32, i32, i32
  }
  func.func @transform_3(%arg0: i32, %arg1: i32) -> (i32, i32, i32, i32) {
    %c0_i32 = arith.constant 0 : i32
    %c0_i32_0 = arith.constant 0 : i32
    %c0_i32_1 = arith.constant 0 : i32
    return %arg0, %arg1, %c0_i32, %c0_i32_0 : i32, i32, i32, i32
  }
}

</mosaic_0001>

<llo_original>
// kernel: _lambda_.1
$region0: #{_lambda_.1}
  #allocation0 [shape = 'u32[]', space=smem, size = 0x4, offset = 0x4, fixed_abs, tag = 'smem constant byte address 0x4 - core index']
  #allocation1 [shape = 'u32[72,128]{1,0:T(1,128)}', space=vmem, size = 0x9000, scoped, tag = 'internal scratch']
  %s0 = inlined_call_operand.vmem [shape: bf16[9,8,4], index: 0, kind: input, shape index: {}]
  %s1 = inlined_call_operand.vmem [shape: bf16[9,8,4], index: 1, kind: input, shape index: {}]
  %s2 = inlined_call_operand.vmem [shape: f32[2,1,4,342], index: 2, kind: input, shape index: {}]
  %s3 = inlined_call_operand.vmem [shape: f32[2,1,8,288], index: 3, kind: output, shape index: {}]
  %s4 = sld [smem:[#allocation0]]
  $region45: #{_lambda_.1} parent=0
    _
  %s6 = ssub.s32 1, %s4
  %s7 = scalar_select 0, %s6, %s4
  loop: start=0, step=1, limit=4
  $region2: #{_lambda_.1} parent=0 // loop_pre_header
    _
  $region3: #{_lambda_.1} parent=0 // loop_header
    %s9 = sphi 0, %s13
    %p10 = scmp.ge.s32.totalorder %s9, 4
    %s16 = sphi 0, %s28
    %s17 = sphi 0, %s24
    %s18 = sphi 0, %s16
    %s19 = sphi 0, %s17
    %s20 = sphi 0, %s18
    %s21 = sphi 0, %s19
    %s29 = sphi 0, %s29
    %s31 = sphi 0, %s29
    %s32 = sphi 0, %s31
    %s46 = sphi 0, %s32
    %s50 = sphi 0, %s50
    %s52 = sphi 0, %s50
    %s53 = sphi 0, %s52
    %s67 = sphi 0, %s53
    %s75 = sphi 0, %s77
    %s78 = sphi 0, %s75
    %s79 = sphi 0, %s78
    %s95 = sphi 0, %s79
    %s103 = sphi 0, %s105
    %s106 = sphi 0, %s103
    %s107 = sphi 0, %s106
    %s123 = sphi 0, %s107
  $region4: #{_lambda_.1} parent=0 // loop_header_branch
    %12 = sbr.rel (%p10) target = $region8
  $region5: #{_lambda_.1} parent=0 // loop_body
    %s14 = ssub.s32 %s9, 1
    %s15 = ssub.s32 %s9, 2
    %s22 = sadd.s32 1, %s17
    %p23 = scmp.ge.s32.totalorder %s22, 1
    %s24 = scalar_select %p23, 0, %s22
    %s25 = sadd.s32 1, %s16
    %s26 = scalar_select %p23, %s25, %s16
    %p27 = scmp.ge.s32.totalorder %s26, 2
    %s28 = scalar_select %p27, 0, %s26
    %s30 = sadd.s32 %s29, 1
    %p33 = scmp.eq.s32.totalorder %s9, 1
    %p34 = scmp.ne.s32.totalorder %s29, %s31
    %p35 = scmp.eq.s32.totalorder %s9, 0
    %p36 = por %p34, %p35
    %p37 = scmp.ne.s32.totalorder %s29, %s31
    %p38 = scmp.eq.s32.totalorder %s14, 1
    %p39 = por %p37, %p38
    %p40 = scmp.ne.s32.totalorder %s31, %s32
    %p41 = scmp.eq.s32.totalorder %s14, 0
    %p42 = por %p40, %p41
    %p43 = scmp.ne.s32.totalorder %s31, %s32
    %p44 = scmp.eq.s32.totalorder %s15, 1
    %p45 = por %p43, %p44
    %p47 = scmp.ne.s32.totalorder %s32, %s46
    %p48 = scmp.eq.s32.totalorder %s15, 0
    %p49 = por %p47, %p48
    %s51 = sadd.s32 %s50, 1
    %p54 = scmp.eq.s32.totalorder %s9, 1
    %p55 = scmp.ne.s32.totalorder %s50, %s52
    %p56 = scmp.eq.s32.totalorder %s9, 0
    %p57 = por %p55, %p56
    %p58 = scmp.ne.s32.totalorder %s50, %s52
    %p59 = scmp.eq.s32.totalorder %s14, 1
    %p60 = por %p58, %p59
    %p61 = scmp.ne.s32.totalorder %s52, %s53
    %p62 = scmp.eq.s32.totalorder %s14, 0
    %p63 = por %p61, %p62
    %p64 = scmp.ne.s32.totalorder %s52, %s53
    %p65 = scmp.eq.s32.totalorder %s15, 1
    %p66 = por %p64, %p65
    %p68 = scmp.ne.s32.totalorder %s53, %s67
    %p69 = scmp.eq.s32.totalorder %s15, 0
    %p70 = por %p68, %p69
    %s71 = ssub.s32 %s16, %s28
    %s72 = ssub.s32 %s17, %s24
    %s73 = sor.u32 %s71, %s72
    %p74 = scmp.eq.s32.totalorder %s73, 0
    %s76 = sadd.s32 %s75, 1
    %s77 = scalar_select %p74, %s75, %s76
    %p80 = pneg %p74
    %p81 = scmp.eq.s32.totalorder %s9, 1
    %p82 = por %p80, %p81
    %p83 = scmp.ne.s32.totalorder %s75, %s78
    %p84 = scmp.eq.s32.totalorder %s9, 0
    %p85 = por %p83, %p84
    %p86 = scmp.ne.s32.totalorder %s75, %s78
    %p87 = scmp.eq.s32.totalorder %s14, 1
    %p88 = por %p86, %p87
    %p89 = scmp.ne.s32.totalorder %s78, %s79
    %p90 = scmp.eq.s32.totalorder %s14, 0
    %p91 = por %p89, %p90
    %p92 = scmp.ne.s32.totalorder %s78, %s79
    %p93 = scmp.eq.s32.totalorder %s15, 1
    %p94 = por %p92, %p93
    %p96 = scmp.ne.s32.totalorder %s79, %s95
    %p97 = scmp.eq.s32.totalorder %s15, 0
    %p98 = por %p96, %p97
    %s99 = ssub.s32 %s16, %s28
    %s100 = ssub.s32 %s17, %s24
    %s101 = sor.u32 %s99, %s100
    %p102 = scmp.eq.s32.totalorder %s101, 0
    %s104 = sadd.s32 %s103, 1
    %s105 = scalar_select %p102, %s103, %s104
    %p108 = pneg %p102
    %p109 = scmp.eq.s32.totalorder %s9, 1
    %p110 = por %p108, %p109
    %p111 = scmp.ne.s32.totalorder %s103, %s106
    %p112 = scmp.eq.s32.totalorder %s9, 0
    %p113 = por %p111, %p112
    %p114 = scmp.ne.s32.totalorder %s103, %s106
    %p115 = scmp.eq.s32.totalorder %s14, 1
    %p116 = por %p114, %p115
    %p117 = scmp.ne.s32.totalorder %s106, %s107
    %p118 = scmp.eq.s32.totalorder %s14, 0
    %p119 = por %p117, %p118
    %p120 = scmp.ne.s32.totalorder %s106, %s107
    %p121 = scmp.eq.s32.totalorder %s15, 1
    %p122 = por %p120, %p121
    %p124 = scmp.ne.s32.totalorder %s107, %s123
    %p125 = scmp.eq.s32.totalorder %s15, 0
    %p126 = por %p124, %p125
    %p127 = scmp.le.s32.totalorder 1, %s9
    %p128 = scmp.lt.s32.totalorder %s9, 3
    %p129 = pnand %p127, %p128
    %p130 = pneg %p129
    // Predicated region
    $region9: #{_lambda_.1} parent=5 // pred_check
      _
    $region10: #{_lambda_.1} parent=5 // pred_check_branch
      %132 = sbr.rel (%p129) target = $region12
    $region11: #{_lambda_.1} parent=5 // pred_region
      %s133 = ssub.s32 %s9, 1
      // Predicated region
      $region13: #{_lambda_.1} parent=11 // pred_check
        %p134 = pneg %p42
      $region14: #{_lambda_.1} parent=11 // pred_check_branch
        %136 = sbr.rel (%p134) target = $region16
      $region15: #{_lambda_.1} parent=11 // pred_region
        _
      $region16: #{_lambda_.1} parent=11 // pred_fallthru
        _
      // Predicated region
      $region17: #{_lambda_.1} parent=11 // pred_check
        %p137 = pneg %p63
      $region18: #{_lambda_.1} parent=11 // pred_check_branch
        %139 = sbr.rel (%p137) target = $region20
      $region19: #{_lambda_.1} parent=11 // pred_region
        _
      $region20: #{_lambda_.1} parent=11 // pred_fallthru
        _
    $region12: #{_lambda_.1} parent=5 // pred_fallthru
      _
    %p140 = scmp.lt.s32.totalorder %s9, 2
    // Predicated region
    $region21: #{_lambda_.1} parent=5 // pred_check
      %p141 = pneg %p140
    $region22: #{_lambda_.1} parent=5 // pred_check_branch
      %143 = sbr.rel (%p141) target = $region24
    $region23: #{_lambda_.1} parent=5 // pred_region
      // Predicated region
      $region25: #{_lambda_.1} parent=23 // pred_check
        %p144 = pneg %p85
      $region26: #{_lambda_.1} parent=23 // pred_check_branch
        %146 = sbr.rel (%p144) target = $region28
      $region27: #{_lambda_.1} parent=23 // pred_region
        %p147 = scmp.lt.s32.totalorder %s16, 1
        %s148 = scalar_select %p147, %s16, 1
        %p149 = scmp.lt.s32.totalorder %s17, 0
        %s150 = scalar_select %p149, %s17, 0
        %s151 = smul.addr %s150, 3
        %s152 = smul.addr %s148, 3
        %s153 = sadd.s32 %s151, %s152
        %s154 = smul.addr %s153, 4
        %s155 = scalar_lea.vmem %s2, %s154
      $region28: #{_lambda_.1} parent=23 // pred_fallthru
        _
    $region24: #{_lambda_.1} parent=5 // pred_fallthru
      _
    %p156 = scmp.le.s32.totalorder 1, %s9
    %p157 = scmp.lt.s32.totalorder %s9, 3
    %p158 = pnand %p156, %p157
    %p159 = pneg %p158
    // Predicated region
    $region29: #{_lambda_.1} parent=5 // pred_check
      _
    $region30: #{_lambda_.1} parent=5 // pred_check_branch
      %161 = sbr.rel (%p158) target = $region32
    $region31: #{_lambda_.1} parent=5 // pred_region
      %s162 = ssub.s32 %s9, 1
      %p163 = pneg %p42
      %p164 = pneg %p39
      %p165 = pneg %p63
      %p166 = pneg %p60
      %p167 = scmp.lt.s32.totalorder %s18, 1
      %s168 = scalar_select %p167, %s18, 1
      %p169 = scmp.lt.s32.totalorder %s19, 0
      %s170 = scalar_select %p169, %s19, 0
      %s171 = smul.addr %s170, 3
      %s172 = smul.addr %s168, 3
      %s173 = sadd.s32 %s171, %s172
      %s174 = smul.addr %s173, 4
      %s175 = scalar_lea.vmem %s2, %s174
      %p176 = pneg %p91
      %p177 = pneg %p88
      %p178 = pneg %p119
      %p179 = pneg %p116
      %p180 = scmp.lt.s32.totalorder %s18, 1
      %s181 = scalar_select %p180, %s18, 1
      %p182 = scmp.lt.s32.totalorder %s19, 0
      %s183 = scalar_select %p182, %s19, 0
      %s184 = smul.addr %s183, 3
      %s185 = smul.addr %s181, 3
      %s186 = sadd.s32 %s184, %s185
      %s187 = smul.addr %s186, 8
      %s188 = scalar_lea.vmem %s3, %s187
      %p189 = scmp.lt.s32.totalorder %s18, 1
      %s190 = scalar_select %p189, %s18, 1
      %p191 = scmp.lt.s32.totalorder %s19, 0
      %s192 = scalar_select %p191, %s19, 0
      %s193 = smul.addr %s192, 3
      %s194 = smul.addr %s190, 3
      %s195 = sadd.s32 %s193, %s194
      %s196 = smul.addr %s195, 4
      %s197 = scalar_lea.vmem %s2, %s196
      %p198 = scmp.lt.s32.totalorder %s18, 1
      %s199 = scalar_select %p198, %s18, 1
      %p200 = scmp.lt.s32.totalorder %s19, 0
      %s201 = scalar_select %p200, %s19, 0
      %s202 = smul.addr %s201, 3
      %s203 = smul.addr %s199, 3
      %s204 = sadd.s32 %s202, %s203
      %s205 = smul.addr %s204, 8
      %s206 = scalar_lea.vmem %s3, %s205
      %v208 = vld [vmem:[%s197] sm:$0xff]
      %v209 = vld [vmem:[%s197 + $0x8] sm:$0xf]
      %212 = vst [vmem:[#allocation1] ss:$2 sm:$0xff] %v208
      %s213 = scalar_lea.vmem [#allocation1], 16
      %214 = vst [vmem:[%s213] ss:$2 sm:$0xff] %v209
      %v215 = vld.sshfl [vmem:[#allocation1] sm:$0xff pattern:$0x75316420]
      %v216 = vld.sshfl [vmem:[#allocation1 + $0x8] sm:$0xff pattern:$0x75316420]
      %v217 = vld.sshfl [vmem:[#allocation1 + $0x10] sm:$0xff pattern:$0x75316420]
      %v221 = vpack.c.bf16 %v216, %v215
      %v222 = vpack.c.bf16 %v217, %v217
      %v223 = vunpack.c.l.bf16 %v221
      %v224 = vunpack.c.h.bf16 %v221
      %v225 = vunpack.c.l.bf16 %v222
      %v228 = vrot.slane %v224, 4
      %vm229 = vcmask 1043456
      %v230 = vsel %vm229, %v223, %v228
      %v232 = vsub.f32 %v208, %v230
      %v233 = vsub.f32 %v209, %v225
      %236 = vst [vmem:[#allocation1] ss:$2 sm:$0xff] %v232
      %s237 = scalar_lea.vmem [#allocation1], 16
      %238 = vst [vmem:[%s237] ss:$2 sm:$0xff] %v233
      %v239 = vld.sshfl [vmem:[#allocation1] sm:$0xff pattern:$0x75316420]
      %v240 = vld.sshfl [vmem:[#allocation1 + $0x8] sm:$0xff pattern:$0x75316420]
      %v241 = vld.sshfl [vmem:[#allocation1 + $0x10] sm:$0xff pattern:$0x75316420]
      %v245 = vpack.c.bf16 %v240, %v239
      %v246 = vpack.c.bf16 %v241, %v241
      %v247 = vld [vmem:[%s0] sm:$0xf]
      %v248 = vld [vmem:[%s1] sm:$0xf]
      %v251 = vunpack.c.l.b16 %v245
      %v252 = vunpack.c.h.b16 %v245
      %v253 = vunpack.c.l.b16 %v246
      %v254 = vpack.c.b16 %v251, %v251
      %v255 = vpack.c.b16 %v252, %v252
      %v256 = vpack.c.b16 %v253, %v253
      %vm257 = vcmask 31744
      %v259 = vsel %vm257, %v247, 0
      %vm261 = vcmask 1041408
      %v263 = vsel %vm261, %v254, 0
      %v266 = vsel %vm261, %v255, 0
      %v269 = vsel %vm261, %v256, 0
      %271 = vmatpush.bf16.msra.mxu0 0
      %272 = vmatpush.bf16.msra.mxu0 0
      %273 = vmatpush.bf16.msra.mxu0 0
      %274 = vmatpush.bf16.msra.mxu0 0
      %275 = vmatpush.bf16.msra.mxu0 0
      %276 = vmatpush.bf16.msra.mxu0 0
      %277 = vmatpush.bf16.msra.mxu0 0
      %278 = vmatpush.bf16.msra.mxu0 %v263
      %279 = vmatmul.bf16.gmra.mxu0 %v259
      %v280 = vpop.f32.mrf.mxu0
      %v281 = vadd.f32 0.0, %v280
      %v282 = vpop.f32.mrf.mxu0
      %283 = vdwg.mxu0
      %284 = vmatpush.bf16.msra.mxu0 0
      %285 = vmatpush.bf16.msra.mxu0 0
      %286 = vmatpush.bf16.msra.mxu0 0
      %287 = vmatpush.bf16.msra.mxu0 0
      %288 = vmatpush.bf16.msra.mxu0 0
      %289 = vmatpush.bf16.msra.mxu0 0
      %290 = vmatpush.bf16.msra.mxu0 0
      %291 = vmatpush.bf16.msra.mxu0 %v266
      %292 = vmatmul.bf16.gmra.mxu0 %v259
      %v293 = vpop.f32.mrf.mxu0
      %v294 = vadd.f32 0.0, %v293
      %v295 = vpop.f32.mrf.mxu0
      %296 = vdwg.mxu0
      %297 = vmatpush.bf16.msra.mxu0 0
      %298 = vmatpush.bf16.msra.mxu0 0
      %299 = vmatpush.bf16.msra.mxu0 0
      %300 = vmatpush.bf16.msra.mxu0 0
      %301 = vmatpush.bf16.msra.mxu0 0
      %302 = vmatpush.bf16.msra.mxu0 0
      %303 = vmatpush.bf16.msra.mxu0 0
      %304 = vmatpush.bf16.msra.mxu0 %v269
      %305 = vmatmul.bf16.gmra.mxu0 %v259
      %v306 = vpop.f32.mrf.mxu0
      %v307 = vadd.f32 0.0, %v306
      %v308 = vpop.f32.mrf.mxu0
      %309 = vdwg.mxu0
      %v312 = vunpack.c.l.b16 %v221
      %v313 = vunpack.c.h.b16 %v221
      %v314 = vunpack.c.l.b16 %v222
      %v315 = vpack.c.b16 %v312, %v312
      %v316 = vpack.c.b16 %v313, %v313
      %v317 = vpack.c.b16 %v314, %v314
      %v319 = vsel %vm261, %v315, 0
      %v322 = vsel %vm261, %v316, 0
      %v325 = vsel %vm261, %v317, 0
      %327 = vmatpush.bf16.msra.mxu0 0
      %328 = vmatpush.bf16.msra.mxu0 0
      %329 = vmatpush.bf16.msra.mxu0 0
      %330 = vmatpush.bf16.msra.mxu0 0
      %331 = vmatpush.bf16.msra.mxu0 0
      %332 = vmatpush.bf16.msra.mxu0 0
      %333 = vmatpush.bf16.msra.mxu0 0
      %334 = vmatpush.bf16.msra.mxu0 %v319
      %335 = vmatmul.bf16.gmra.mxu0 %v259
      %v336 = vpop.f32.mrf.mxu0
      %v337 = vadd.f32 %v281, %v336
      %v338 = vpop.f32.mrf.mxu0
      %339 = vdwg.mxu0
      %340 = vmatpush.bf16.msra.mxu0 0
      %341 = vmatpush.bf16.msra.mxu0 0
      %342 = vmatpush.bf16.msra.mxu0 0
      %343 = vmatpush.bf16.msra.mxu0 0
      %344 = vmatpush.bf16.msra.mxu0 0
      %345 = vmatpush.bf16.msra.mxu0 0
      %346 = vmatpush.bf16.msra.mxu0 0
      %347 = vmatpush.bf16.msra.mxu0 %v322
      %348 = vmatmul.bf16.gmra.mxu0 %v259
      %v349 = vpop.f32.mrf.mxu0
      %v350 = vadd.f32 %v294, %v349
      %v351 = vpop.f32.mrf.mxu0
      %352 = vdwg.mxu0
      %353 = vmatpush.bf16.msra.mxu0 0
      %354 = vmatpush.bf16.msra.mxu0 0
      %355 = vmatpush.bf16.msra.mxu0 0
      %356 = vmatpush.bf16.msra.mxu0 0
      %357 = vmatpush.bf16.msra.mxu0 0
      %358 = vmatpush.bf16.msra.mxu0 0
      %359 = vmatpush.bf16.msra.mxu0 0
      %360 = vmatpush.bf16.msra.mxu0 %v325
      %361 = vmatmul.bf16.gmra.mxu0 %v259
      %v362 = vpop.f32.mrf.mxu0
      %v363 = vadd.f32 %v307, %v362
      %v364 = vpop.f32.mrf.mxu0
      %365 = vdwg.mxu0
      %v367 = vsel %vm257, %v248, 0
      %369 = vmatpush.bf16.msra.mxu0 0
      %370 = vmatpush.bf16.msra.mxu0 0
      %371 = vmatpush.bf16.msra.mxu0 0
      %372 = vmatpush.bf16.msra.mxu0 0
      %373 = vmatpush.bf16.msra.mxu0 0
      %374 = vmatpush.bf16.msra.mxu0 0
      %375 = vmatpush.bf16.msra.mxu0 0
      %376 = vmatpush.bf16.msra.mxu0 %v319
      %377 = vmatmul.bf16.gmra.mxu0 %v367
      %v378 = vpop.f32.mrf.mxu0
      %v379 = vadd.f32 0.0, %v378
      %v380 = vpop.f32.mrf.mxu0
      %381 = vdwg.mxu0
      %382 = vmatpush.bf16.msra.mxu0 0
      %383 = vmatpush.bf16.msra.mxu0 0
      %384 = vmatpush.bf16.msra.mxu0 0
      %385 = vmatpush.bf16.msra.mxu0 0
      %386 = vmatpush.bf16.msra.mxu0 0
      %387 = vmatpush.bf16.msra.mxu0 0
      %388 = vmatpush.bf16.msra.mxu0 0
      %389 = vmatpush.bf16.msra.mxu0 %v322
      %390 = vmatmul.bf16.gmra.mxu0 %v367
      %v391 = vpop.f32.mrf.mxu0
      %v392 = vadd.f32 0.0, %v391
      %v393 = vpop.f32.mrf.mxu0
      %394 = vdwg.mxu0
      %395 = vmatpush.bf16.msra.mxu0 0
      %396 = vmatpush.bf16.msra.mxu0 0
      %397 = vmatpush.bf16.msra.mxu0 0
      %398 = vmatpush.bf16.msra.mxu0 0
      %399 = vmatpush.bf16.msra.mxu0 0
      %400 = vmatpush.bf16.msra.mxu0 0
      %401 = vmatpush.bf16.msra.mxu0 0
      %402 = vmatpush.bf16.msra.mxu0 %v325
      %403 = vmatmul.bf16.gmra.mxu0 %v367
      %v404 = vpop.f32.mrf.mxu0
      %v405 = vadd.f32 0.0, %v404
      %v406 = vpop.f32.mrf.mxu0
      %407 = vdwg.mxu0
      %v408 = vadd.f32 %v337, %v379
      %v409 = vadd.f32 %v350, %v392
      %v410 = vadd.f32 %v363, %v405
      %s411 = scalar_lea.vmem %s0, 4
      %v412 = vld [vmem:[%s411] sm:$0xf]
      %s413 = scalar_lea.vmem %s1, 4
      %v414 = vld [vmem:[%s413] sm:$0xf]
      %415 = vrot.lane.b32.xlu0 %v315, 127
      %v416 = vpop.permute.xlu0 %415
      %417 = vrot.lane.b32.xlu0 %v316, 127
      %v418 = vpop.permute.xlu0 %417
      %419 = vrot.lane.b32.xlu0 %v317, 127
      %v420 = vpop.permute.xlu0 %419
      %vm421 = vcmask 1039360
      %v422 = vsel %vm421, %v416, %v418
      %v423 = vsel %vm421, %v418, %v420
      %v425 = vsel %vm257, %v412, 0
      %v428 = vsel %vm261, %v422, 0
      %v431 = vsel %vm261, %v423, 0
      %v434 = vsel %vm261, %v420, 0
      %436 = vmatpush.bf16.msra.mxu0 0
      %437 = vmatpush.bf16.msra.mxu0 0
      %438 = vmatpush.bf16.msra.mxu0 0
      %439 = vmatpush.bf16.msra.mxu0 0
      %440 = vmatpush.bf16.msra.mxu0 0
      %441 = vmatpush.bf16.msra.mxu0 0
      %442 = vmatpush.bf16.msra.mxu0 0
      %443 = vmatpush.bf16.msra.mxu0 %v428
      %444 = vmatmul.bf16.gmra.mxu0 %v425
      %v445 = vpop.f32.mrf.mxu0
      %v446 = vadd.f32 0.0, %v445
      %v447 = vpop.f32.mrf.mxu0
      %448 = vdwg.mxu0
      %449 = vmatpush.bf16.msra.mxu0 0
      %450 = vmatpush.bf16.msra.mxu0 0
      %451 = vmatpush.bf16.msra.mxu0 0
      %452 = vmatpush.bf16.msra.mxu0 0
      %453 = vmatpush.bf16.msra.mxu0 0
      %454 = vmatpush.bf16.msra.mxu0 0
      %455 = vmatpush.bf16.msra.mxu0 0
      %456 = vmatpush.bf16.msra.mxu0 %v431
      %457 = vmatmul.bf16.gmra.mxu0 %v425
      %v458 = vpop.f32.mrf.mxu0
      %v459 = vadd.f32 0.0, %v458
      %v460 = vpop.f32.mrf.mxu0
      %461 = vdwg.mxu0
      %462 = vmatpush.bf16.msra.mxu0 0
      %463 = vmatpush.bf16.msra.mxu0 0
      %464 = vmatpush.bf16.msra.mxu0 0
      %465 = vmatpush.bf16.msra.mxu0 0
      %466 = vmatpush.bf16.msra.mxu0 0
      %467 = vmatpush.bf16.msra.mxu0 0
      %468 = vmatpush.bf16.msra.mxu0 0
      %469 = vmatpush.bf16.msra.mxu0 %v434
      %470 = vmatmul.bf16.gmra.mxu0 %v425
      %v471 = vpop.f32.mrf.mxu0
      %v472 = vadd.f32 0.0, %v471
      %v473 = vpop.f32.mrf.mxu0
      %474 = vdwg.mxu0
      %v475 = vadd.f32 %v408, %v446
      %v476 = vadd.f32 %v409, %v459
      %v477 = vadd.f32 %v410, %v472
      %478 = vrot.lane.b32.xlu0 %v254, 127
      %v479 = vpop.permute.xlu0 %478
      %480 = vrot.lane.b32.xlu0 %v255, 127
      %v481 = vpop.permute.xlu0 %480
      %482 = vrot.lane.b32.xlu0 %v256, 127
      %v483 = vpop.permute.xlu0 %482
      %v484 = vsel %vm421, %v479, %v481
      %v485 = vsel %vm421, %v481, %v483
      %v487 = vsel %vm261, %v484, 0
      %v490 = vsel %vm261, %v485, 0
      %v493 = vsel %vm261, %v483, 0
      %495 = vmatpush.bf16.msra.mxu0 0
      %496 = vmatpush.bf16.msra.mxu0 0
      %497 = vmatpush.bf16.msra.mxu0 0
      %498 = vmatpush.bf16.msra.mxu0 0
      %499 = vmatpush.bf16.msra.mxu0 0
      %500 = vmatpush.bf16.msra.mxu0 0
      %501 = vmatpush.bf16.msra.mxu0 0
      %502 = vmatpush.bf16.msra.mxu0 %v487
      %503 = vmatmul.bf16.gmra.mxu0 %v425
      %v504 = vpop.f32.mrf.mxu0
      %v505 = vadd.f32 0.0, %v504
      %v506 = vpop.f32.mrf.mxu0
      %507 = vdwg.mxu0
      %508 = vmatpush.bf16.msra.mxu0 0
      %509 = vmatpush.bf16.msra.mxu0 0
      %510 = vmatpush.bf16.msra.mxu0 0
      %511 = vmatpush.bf16.msra.mxu0 0
      %512 = vmatpush.bf16.msra.mxu0 0
      %513 = vmatpush.bf16.msra.mxu0 0
      %514 = vmatpush.bf16.msra.mxu0 0
      %515 = vmatpush.bf16.msra.mxu0 %v490
      %516 = vmatmul.bf16.gmra.mxu0 %v425
      %v517 = vpop.f32.mrf.mxu0
      %v518 = vadd.f32 0.0, %v517
      %v519 = vpop.f32.mrf.mxu0
      %520 = vdwg.mxu0
      %521 = vmatpush.bf16.msra.mxu0 0
      %522 = vmatpush.bf16.msra.mxu0 0
      %523 = vmatpush.bf16.msra.mxu0 0
      %524 = vmatpush.bf16.msra.mxu0 0
      %525 = vmatpush.bf16.msra.mxu0 0
      %526 = vmatpush.bf16.msra.mxu0 0
      %527 = vmatpush.bf16.msra.mxu0 0
      %528 = vmatpush.bf16.msra.mxu0 %v493
      %529 = vmatmul.bf16.gmra.mxu0 %v425
      %v530 = vpop.f32.mrf.mxu0
      %v531 = vadd.f32 0.0, %v530
      %v532 = vpop.f32.mrf.mxu0
      %533 = vdwg.mxu0
      %v534 = vadd.f32 %v475, %v505
      %v535 = vadd.f32 %v476, %v518
      %v536 = vadd.f32 %v477, %v531
      %v538 = vsel %vm257, %v414, 0
      %540 = vmatpush.bf16.msra.mxu0 0
      %541 = vmatpush.bf16.msra.mxu0 0
      %542 = vmatpush.bf16.msra.mxu0 0
      %543 = vmatpush.bf16.msra.mxu0 0
      %544 = vmatpush.bf16.msra.mxu0 0
      %545 = vmatpush.bf16.msra.mxu0 0
      %546 = vmatpush.bf16.msra.mxu0 0
      %547 = vmatpush.bf16.msra.mxu0 %v428
      %548 = vmatmul.bf16.gmra.mxu0 %v538
      %v549 = vpop.f32.mrf.mxu0
      %v550 = vadd.f32 0.0, %v549
      %v551 = vpop.f32.mrf.mxu0
      %552 = vdwg.mxu0
      %553 = vmatpush.bf16.msra.mxu0 0
      %554 = vmatpush.bf16.msra.mxu0 0
      %555 = vmatpush.bf16.msra.mxu0 0
      %556 = vmatpush.bf16.msra.mxu0 0
      %557 = vmatpush.bf16.msra.mxu0 0
      %558 = vmatpush.bf16.msra.mxu0 0
      %559 = vmatpush.bf16.msra.mxu0 0
      %560 = vmatpush.bf16.msra.mxu0 %v431
      %561 = vmatmul.bf16.gmra.mxu0 %v538
      %v562 = vpop.f32.mrf.mxu0
      %v563 = vadd.f32 0.0, %v562
      %v564 = vpop.f32.mrf.mxu0
      %565 = vdwg.mxu0
      %566 = vmatpush.bf16.msra.mxu0 0
      %567 = vmatpush.bf16.msra.mxu0 0
      %568 = vmatpush.bf16.msra.mxu0 0
      %569 = vmatpush.bf16.msra.mxu0 0
      %570 = vmatpush.bf16.msra.mxu0 0
      %571 = vmatpush.bf16.msra.mxu0 0
      %572 = vmatpush.bf16.msra.mxu0 0
      %573 = vmatpush.bf16.msra.mxu0 %v434
      %574 = vmatmul.bf16.gmra.mxu0 %v538
      %v575 = vpop.f32.mrf.mxu0
      %v576 = vadd.f32 0.0, %v575
      %v577 = vpop.f32.mrf.mxu0
      %578 = vdwg.mxu0
      %v579 = vadd.f32 %v534, %v550
      %v580 = vadd.f32 %v535, %v563
      %v581 = vadd.f32 %v536, %v576
      %s582 = scalar_lea.vmem %s0, 8
      %v583 = vld [vmem:[%s582] sm:$0xf]
      %s584 = scalar_lea.vmem %s1, 8
      %v585 = vld [vmem:[%s584] sm:$0xf]
      %586 = vrot.lane.b32.xlu0 %v315, 126
      %v587 = vpop.permute.xlu0 %586
      %588 = vrot.lane.b32.xlu0 %v316, 126
      %v589 = vpop.permute.xlu0 %588
      %590 = vrot.lane.b32.xlu0 %v317, 126
      %v591 = vpop.permute.xlu0 %590
      %vm592 = vcmask 1031168
      %v593 = vsel %vm592, %v587, %v589
      %v594 = vsel %vm592, %v589, %v591
      %v596 = vsel %vm257, %v583, 0
      %v599 = vsel %vm261, %v593, 0
      %v602 = vsel %vm261, %v594, 0
      %v605 = vsel %vm261, %v591, 0
      %607 = vmatpush.bf16.msra.mxu0 0
      %608 = vmatpush.bf16.msra.mxu0 0
      %609 = vmatpush.bf16.msra.mxu0 0
      %610 = vmatpush.bf16.msra.mxu0 0
      %611 = vmatpush.bf16.msra.mxu0 0
      %612 = vmatpush.bf16.msra.mxu0 0
      %613 = vmatpush.bf16.msra.mxu0 0
      %614 = vmatpush.bf16.msra.mxu0 %v599
      %615 = vmatmul.bf16.gmra.mxu0 %v596
      %v616 = vpop.f32.mrf.mxu0
      %v617 = vadd.f32 0.0, %v616
      %v618 = vpop.f32.mrf.mxu0
      %619 = vdwg.mxu0
      %620 = vmatpush.bf16.msra.mxu0 0
      %621 = vmatpush.bf16.msra.mxu0 0
      %622 = vmatpush.bf16.msra.mxu0 0
      %623 = vmatpush.bf16.msra.mxu0 0
      %624 = vmatpush.bf16.msra.mxu0 0
      %625 = vmatpush.bf16.msra.mxu0 0
      %626 = vmatpush.bf16.msra.mxu0 0
      %627 = vmatpush.bf16.msra.mxu0 %v602
      %628 = vmatmul.bf16.gmra.mxu0 %v596
      %v629 = vpop.f32.mrf.mxu0
      %v630 = vadd.f32 0.0, %v629
      %v631 = vpop.f32.mrf.mxu0
      %632 = vdwg.mxu0
      %633 = vmatpush.bf16.msra.mxu0 0
      %634 = vmatpush.bf16.msra.mxu0 0
      %635 = vmatpush.bf16.msra.mxu0 0
      %636 = vmatpush.bf16.msra.mxu0 0
      %637 = vmatpush.bf16.msra.mxu0 0
      %638 = vmatpush.bf16.msra.mxu0 0
      %639 = vmatpush.bf16.msra.mxu0 0
      %640 = vmatpush.bf16.msra.mxu0 %v605
      %641 = vmatmul.bf16.gmra.mxu0 %v596
      %v642 = vpop.f32.mrf.mxu0
      %v643 = vadd.f32 0.0, %v642
      %v644 = vpop.f32.mrf.mxu0
      %645 = vdwg.mxu0
      %v646 = vadd.f32 %v579, %v617
      %v647 = vadd.f32 %v580, %v630
      %v648 = vadd.f32 %v581, %v643
      %649 = vrot.lane.b32.xlu0 %v254, 126
      %v650 = vpop.permute.xlu0 %649
      %651 = vrot.lane.b32.xlu0 %v255, 126
      %v652 = vpop.permute.xlu0 %651
      %653 = vrot.lane.b32.xlu0 %v256, 126
      %v654 = vpop.permute.xlu0 %653
      %v655 = vsel %vm592, %v650, %v652
      %v656 = vsel %vm592, %v652, %v654
      %v658 = vsel %vm261, %v655, 0
      %v661 = vsel %vm261, %v656, 0
      %v664 = vsel %vm261, %v654, 0
      %666 = vmatpush.bf16.msra.mxu0 0
      %667 = vmatpush.bf16.msra.mxu0 0
      %668 = vmatpush.bf16.msra.mxu0 0
      %669 = vmatpush.bf16.msra.mxu0 0
      %670 = vmatpush.bf16.msra.mxu0 0
      %671 = vmatpush.bf16.msra.mxu0 0
      %672 = vmatpush.bf16.msra.mxu0 0
      %673 = vmatpush.bf16.msra.mxu0 %v658
      %674 = vmatmul.bf16.gmra.mxu0 %v596
      %v675 = vpop.f32.mrf.mxu0
      %v676 = vadd.f32 0.0, %v675
      %v677 = vpop.f32.mrf.mxu0
      %678 = vdwg.mxu0
      %679 = vmatpush.bf16.msra.mxu0 0
      %680 = vmatpush.bf16.msra.mxu0 0
      %681 = vmatpush.bf16.msra.mxu0 0
      %682 = vmatpush.bf16.msra.mxu0 0
      %683 = vmatpush.bf16.msra.mxu0 0
      %684 = vmatpush.bf16.msra.mxu0 0
      %685 = vmatpush.bf16.msra.mxu0 0
      %686 = vmatpush.bf16.msra.mxu0 %v661
      %687 = vmatmul.bf16.gmra.mxu0 %v596
      %v688 = vpop.f32.mrf.mxu0
      %v689 = vadd.f32 0.0, %v688
      %v690 = vpop.f32.mrf.mxu0
      %691 = vdwg.mxu0
      %692 = vmatpush.bf16.msra.mxu0 0
      %693 = vmatpush.bf16.msra.mxu0 0
      %694 = vmatpush.bf16.msra.mxu0 0
      %695 = vmatpush.bf16.msra.mxu0 0
      %696 = vmatpush.bf16.msra.mxu0 0
      %697 = vmatpush.bf16.msra.mxu0 0
      %698 = vmatpush.bf16.msra.mxu0 0
      %699 = vmatpush.bf16.msra.mxu0 %v664
      %700 = vmatmul.bf16.gmra.mxu0 %v596
      %v701 = vpop.f32.mrf.mxu0
      %v702 = vadd.f32 0.0, %v701
      %v703 = vpop.f32.mrf.mxu0
      %704 = vdwg.mxu0
      %v705 = vadd.f32 %v646, %v676
      %v706 = vadd.f32 %v647, %v689
      %v707 = vadd.f32 %v648, %v702
      %v709 = vsel %vm257, %v585, 0
      %711 = vmatpush.bf16.msra.mxu0 0
      %712 = vmatpush.bf16.msra.mxu0 0
      %713 = vmatpush.bf16.msra.mxu0 0
      %714 = vmatpush.bf16.msra.mxu0 0
      %715 = vmatpush.bf16.msra.mxu0 0
      %716 = vmatpush.bf16.msra.mxu0 0
      %717 = vmatpush.bf16.msra.mxu0 0
      %718 = vmatpush.bf16.msra.mxu0 %v599
      %719 = vmatmul.bf16.gmra.mxu0 %v709
      %v720 = vpop.f32.mrf.mxu0
      %v721 = vadd.f32 0.0, %v720
      %v722 = vpop.f32.mrf.mxu0
      %723 = vdwg.mxu0
      %724 = vmatpush.bf16.msra.mxu0 0
      %725 = vmatpush.bf16.msra.mxu0 0
      %726 = vmatpush.bf16.msra.mxu0 0
      %727 = vmatpush.bf16.msra.mxu0 0
      %728 = vmatpush.bf16.msra.mxu0 0
      %729 = vmatpush.bf16.msra.mxu0 0
      %730 = vmatpush.bf16.msra.mxu0 0
      %731 = vmatpush.bf16.msra.mxu0 %v602
      %732 = vmatmul.bf16.gmra.mxu0 %v709
      %v733 = vpop.f32.mrf.mxu0
      %v734 = vadd.f32 0.0, %v733
      %v735 = vpop.f32.mrf.mxu0
      %736 = vdwg.mxu0
      %737 = vmatpush.bf16.msra.mxu0 0
      %738 = vmatpush.bf16.msra.mxu0 0
      %739 = vmatpush.bf16.msra.mxu0 0
      %740 = vmatpush.bf16.msra.mxu0 0
      %741 = vmatpush.bf16.msra.mxu0 0
      %742 = vmatpush.bf16.msra.mxu0 0
      %743 = vmatpush.bf16.msra.mxu0 0
      %744 = vmatpush.bf16.msra.mxu0 %v605
      %745 = vmatmul.bf16.gmra.mxu0 %v709
      %v746 = vpop.f32.mrf.mxu0
      %v747 = vadd.f32 0.0, %v746
      %v748 = vpop.f32.mrf.mxu0
      %749 = vdwg.mxu0
      %v750 = vadd.f32 %v705, %v721
      %v751 = vadd.f32 %v706, %v734
      %v752 = vadd.f32 %v707, %v747
      %s753 = scalar_lea.vmem %s0, 12
      %v754 = vld [vmem:[%s753] sm:$0xf]
      %s755 = scalar_lea.vmem %s1, 12
      %v756 = vld [vmem:[%s755] sm:$0xf]
      %757 = vrot.lane.b32.xlu0 %v315, 110
      %v758 = vpop.permute.xlu0 %757
      %759 = vrot.lane.b32.xlu0 %v316, 110
      %v760 = vpop.permute.xlu0 %759
      %761 = vrot.lane.b32.xlu0 %v317, 110
      %v762 = vpop.permute.xlu0 %761
      %vm763 = vcmask 900096
      %v764 = vsel %vm763, %v758, %v760
      %v765 = vsel %vm763, %v760, %v762
      %v767 = vsel %vm257, %v754, 0
      %v770 = vsel %vm261, %v764, 0
      %v773 = vsel %vm261, %v765, 0
      %v776 = vsel %vm261, %v762, 0
      %778 = vmatpush.bf16.msra.mxu0 0
      %779 = vmatpush.bf16.msra.mxu0 0
      %780 = vmatpush.bf16.msra.mxu0 0
      %781 = vmatpush.bf16.msra.mxu0 0
      %782 = vmatpush.bf16.msra.mxu0 0
      %783 = vmatpush.bf16.msra.mxu0 0
      %784 = vmatpush.bf16.msra.mxu0 0
      %785 = vmatpush.bf16.msra.mxu0 %v770
      %786 = vmatmul.bf16.gmra.mxu0 %v767
      %v787 = vpop.f32.mrf.mxu0
      %v788 = vadd.f32 0.0, %v787
      %v789 = vpop.f32.mrf.mxu0
      %790 = vdwg.mxu0
      %791 = vmatpush.bf16.msra.mxu0 0
      %792 = vmatpush.bf16.msra.mxu0 0
      %793 = vmatpush.bf16.msra.mxu0 0
      %794 = vmatpush.bf16.msra.mxu0 0
      %795 = vmatpush.bf16.msra.mxu0 0
      %796 = vmatpush.bf16.msra.mxu0 0
      %797 = vmatpush.bf16.msra.mxu0 0
      %798 = vmatpush.bf16.msra.mxu0 %v773
      %799 = vmatmul.bf16.gmra.mxu0 %v767
      %v800 = vpop.f32.mrf.mxu0
      %v801 = vadd.f32 0.0, %v800
      %v802 = vpop.f32.mrf.mxu0
      %803 = vdwg.mxu0
      %804 = vmatpush.bf16.msra.mxu0 0
      %805 = vmatpush.bf16.msra.mxu0 0
      %806 = vmatpush.bf16.msra.mxu0 0
      %807 = vmatpush.bf16.msra.mxu0 0
      %808 = vmatpush.bf16.msra.mxu0 0
      %809 = vmatpush.bf16.msra.mxu0 0
      %810 = vmatpush.bf16.msra.mxu0 0
      %811 = vmatpush.bf16.msra.mxu0 %v776
      %812 = vmatmul.bf16.gmra.mxu0 %v767
      %v813 = vpop.f32.mrf.mxu0
      %v814 = vadd.f32 0.0, %v813
      %v815 = vpop.f32.mrf.mxu0
      %816 = vdwg.mxu0
      %v817 = vadd.f32 %v750, %v788
      %v818 = vadd.f32 %v751, %v801
      %v819 = vadd.f32 %v752, %v814
      %820 = vrot.lane.b32.xlu0 %v254, 110
      %v821 = vpop.permute.xlu0 %820
      %822 = vrot.lane.b32.xlu0 %v255, 110
      %v823 = vpop.permute.xlu0 %822
      %824 = vrot.lane.b32.xlu0 %v256, 110
      %v825 = vpop.permute.xlu0 %824
      %v826 = vsel %vm763, %v821, %v823
      %v827 = vsel %vm763, %v823, %v825
      %v829 = vsel %vm261, %v826, 0
      %v832 = vsel %vm261, %v827, 0
      %v835 = vsel %vm261, %v825, 0
      %837 = vmatpush.bf16.msra.mxu0 0
      %838 = vmatpush.bf16.msra.mxu0 0
      %839 = vmatpush.bf16.msra.mxu0 0
      %840 = vmatpush.bf16.msra.mxu0 0
      %841 = vmatpush.bf16.msra.mxu0 0
      %842 = vmatpush.bf16.msra.mxu0 0
      %843 = vmatpush.bf16.msra.mxu0 0
      %844 = vmatpush.bf16.msra.mxu0 %v829
      %845 = vmatmul.bf16.gmra.mxu0 %v767
      %v846 = vpop.f32.mrf.mxu0
      %v847 = vadd.f32 0.0, %v846
      %v848 = vpop.f32.mrf.mxu0
      %849 = vdwg.mxu0
      %850 = vmatpush.bf16.msra.mxu0 0
      %851 = vmatpush.bf16.msra.mxu0 0
      %852 = vmatpush.bf16.msra.mxu0 0
      %853 = vmatpush.bf16.msra.mxu0 0
      %854 = vmatpush.bf16.msra.mxu0 0
      %855 = vmatpush.bf16.msra.mxu0 0
      %856 = vmatpush.bf16.msra.mxu0 0
      %857 = vmatpush.bf16.msra.mxu0 %v832
      %858 = vmatmul.bf16.gmra.mxu0 %v767
      %v859 = vpop.f32.mrf.mxu0
      %v860 = vadd.f32 0.0, %v859
      %v861 = vpop.f32.mrf.mxu0
      %862 = vdwg.mxu0
      %863 = vmatpush.bf16.msra.mxu0 0
      %864 = vmatpush.bf16.msra.mxu0 0
      %865 = vmatpush.bf16.msra.mxu0 0
      %866 = vmatpush.bf16.msra.mxu0 0
      %867 = vmatpush.bf16.msra.mxu0 0
      %868 = vmatpush.bf16.msra.mxu0 0
      %869 = vmatpush.bf16.msra.mxu0 0
      %870 = vmatpush.bf16.msra.mxu0 %v835
      %871 = vmatmul.bf16.gmra.mxu0 %v767
      %v872 = vpop.f32.mrf.mxu0
      %v873 = vadd.f32 0.0, %v872
      %v874 = vpop.f32.mrf.mxu0
      %875 = vdwg.mxu0
      %v876 = vadd.f32 %v817, %v847
      %v877 = vadd.f32 %v818, %v860
      %v878 = vadd.f32 %v819, %v873
      %v880 = vsel %vm257, %v756, 0
      %882 = vmatpush.bf16.msra.mxu0 0
      %883 = vmatpush.bf16.msra.mxu0 0
      %884 = vmatpush.bf16.msra.mxu0 0
      %885 = vmatpush.bf16.msra.mxu0 0
      %886 = vmatpush.bf16.msra.mxu0 0
      %887 = vmatpush.bf16.msra.mxu0 0
      %888 = vmatpush.bf16.msra.mxu0 0
      %889 = vmatpush.bf16.msra.mxu0 %v770
      %890 = vmatmul.bf16.gmra.mxu0 %v880
      %v891 = vpop.f32.mrf.mxu0
      %v892 = vadd.f32 0.0, %v891
      %v893 = vpop.f32.mrf.mxu0
      %894 = vdwg.mxu0
      %895 = vmatpush.bf16.msra.mxu0 0
      %896 = vmatpush.bf16.msra.mxu0 0
      %897 = vmatpush.bf16.msra.mxu0 0
      %898 = vmatpush.bf16.msra.mxu0 0
      %899 = vmatpush.bf16.msra.mxu0 0
      %900 = vmatpush.bf16.msra.mxu0 0
      %901 = vmatpush.bf16.msra.mxu0 0
      %902 = vmatpush.bf16.msra.mxu0 %v773
      %903 = vmatmul.bf16.gmra.mxu0 %v880
      %v904 = vpop.f32.mrf.mxu0
      %v905 = vadd.f32 0.0, %v904
      %v906 = vpop.f32.mrf.mxu0
      %907 = vdwg.mxu0
      %908 = vmatpush.bf16.msra.mxu0 0
      %909 = vmatpush.bf16.msra.mxu0 0
      %910 = vmatpush.bf16.msra.mxu0 0
      %911 = vmatpush.bf16.msra.mxu0 0
      %912 = vmatpush.bf16.msra.mxu0 0
      %913 = vmatpush.bf16.msra.mxu0 0
      %914 = vmatpush.bf16.msra.mxu0 0
      %915 = vmatpush.bf16.msra.mxu0 %v776
      %916 = vmatmul.bf16.gmra.mxu0 %v880
      %v917 = vpop.f32.mrf.mxu0
      %v918 = vadd.f32 0.0, %v917
      %v919 = vpop.f32.mrf.mxu0
      %920 = vdwg.mxu0
      %v921 = vadd.f32 %v876, %v892
      %v922 = vadd.f32 %v877, %v905
      %v923 = vadd.f32 %v878, %v918
      %s924 = scalar_lea.vmem %s0, 16
      %v925 = vld [vmem:[%s924] sm:$0xf]
      %s926 = scalar_lea.vmem %s1, 16
      %v927 = vld [vmem:[%s926] sm:$0xf]
      %928 = vrot.lane.b32.xlu0 %v315, 109
      %v929 = vpop.permute.xlu0 %928
      %930 = vrot.lane.b32.xlu0 %v316, 109
      %v931 = vpop.permute.xlu0 %930
      %932 = vrot.lane.b32.xlu0 %v317, 109
      %v933 = vpop.permute.xlu0 %932
      %vm934 = vcmask 891904
      %v935 = vsel %vm934, %v929, %v931
      %v936 = vsel %vm934, %v931, %v933
      %v938 = vsel %vm257, %v925, 0
      %v941 = vsel %vm261, %v935, 0
      %v944 = vsel %vm261, %v936, 0
      %v947 = vsel %vm261, %v933, 0
      %949 = vmatpush.bf16.msra.mxu0 0
      %950 = vmatpush.bf16.msra.mxu0 0
      %951 = vmatpush.bf16.msra.mxu0 0
      %952 = vmatpush.bf16.msra.mxu0 0
      %953 = vmatpush.bf16.msra.mxu0 0
      %954 = vmatpush.bf16.msra.mxu0 0
      %955 = vmatpush.bf16.msra.mxu0 0
      %956 = vmatpush.bf16.msra.mxu0 %v941
      %957 = vmatmul.bf16.gmra.mxu0 %v938
      %v958 = vpop.f32.mrf.mxu0
      %v959 = vadd.f32 0.0, %v958
      %v960 = vpop.f32.mrf.mxu0
      %961 = vdwg.mxu0
      %962 = vmatpush.bf16.msra.mxu0 0
      %963 = vmatpush.bf16.msra.mxu0 0
      %964 = vmatpush.bf16.msra.mxu0 0
      %965 = vmatpush.bf16.msra.mxu0 0
      %966 = vmatpush.bf16.msra.mxu0 0
      %967 = vmatpush.bf16.msra.mxu0 0
      %968 = vmatpush.bf16.msra.mxu0 0
      %969 = vmatpush.bf16.msra.mxu0 %v944
      %970 = vmatmul.bf16.gmra.mxu0 %v938
      %v971 = vpop.f32.mrf.mxu0
      %v972 = vadd.f32 0.0, %v971
      %v973 = vpop.f32.mrf.mxu0
      %974 = vdwg.mxu0
      %975 = vmatpush.bf16.msra.mxu0 0
      %976 = vmatpush.bf16.msra.mxu0 0
      %977 = vmatpush.bf16.msra.mxu0 0
      %978 = vmatpush.bf16.msra.mxu0 0
      %979 = vmatpush.bf16.msra.mxu0 0
      %980 = vmatpush.bf16.msra.mxu0 0
      %981 = vmatpush.bf16.msra.mxu0 0
      %982 = vmatpush.bf16.msra.mxu0 %v947
      %983 = vmatmul.bf16.gmra.mxu0 %v938
      %v984 = vpop.f32.mrf.mxu0
      %v985 = vadd.f32 0.0, %v984
      %v986 = vpop.f32.mrf.mxu0
      %987 = vdwg.mxu0
      %v988 = vadd.f32 %v921, %v959
      %v989 = vadd.f32 %v922, %v972
      %v990 = vadd.f32 %v923, %v985
      %991 = vrot.lane.b32.xlu0 %v254, 109
      %v992 = vpop.permute.xlu0 %991
      %993 = vrot.lane.b32.xlu0 %v255, 109
      %v994 = vpop.permute.xlu0 %993
      %995 = vrot.lane.b32.xlu0 %v256, 109
      %v996 = vpop.permute.xlu0 %995
      %v997 = vsel %vm934, %v992, %v994
      %v998 = vsel %vm934, %v994, %v996
      %v1000 = vsel %vm261, %v997, 0
      %v1003 = vsel %vm261, %v998, 0
      %v1006 = vsel %vm261, %v996, 0
      %1008 = vmatpush.bf16.msra.mxu0 0
      %1009 = vmatpush.bf16.msra.mxu0 0
      %1010 = vmatpush.bf16.msra.mxu0 0
      %1011 = vmatpush.bf16.msra.mxu0 0
      %1012 = vmatpush.bf16.msra.mxu0 0
      %1013 = vmatpush.bf16.msra.mxu0 0
      %1014 = vmatpush.bf16.msra.mxu0 0
      %1015 = vmatpush.bf16.msra.mxu0 %v1000
      %1016 = vmatmul.bf16.gmra.mxu0 %v938
      %v1017 = vpop.f32.mrf.mxu0
      %v1018 = vadd.f32 0.0, %v1017
      %v1019 = vpop.f32.mrf.mxu0
      %1020 = vdwg.mxu0
      %1021 = vmatpush.bf16.msra.mxu0 0
      %1022 = vmatpush.bf16.msra.mxu0 0
      %1023 = vmatpush.bf16.msra.mxu0 0
      %1024 = vmatpush.bf16.msra.mxu0 0
      %1025 = vmatpush.bf16.msra.mxu0 0
      %1026 = vmatpush.bf16.msra.mxu0 0
      %1027 = vmatpush.bf16.msra.mxu0 0
      %1028 = vmatpush.bf16.msra.mxu0 %v1003
      %1029 = vmatmul.bf16.gmra.mxu0 %v938
      %v1030 = vpop.f32.mrf.mxu0
      %v1031 = vadd.f32 0.0, %v1030
      %v1032 = vpop.f32.mrf.mxu0
      %1033 = vdwg.mxu0
      %1034 = vmatpush.bf16.msra.mxu0 0
      %1035 = vmatpush.bf16.msra.mxu0 0
      %1036 = vmatpush.bf16.msra.mxu0 0
      %1037 = vmatpush.bf16.msra.mxu0 0
      %1038 = vmatpush.bf16.msra.mxu0 0
      %1039 = vmatpush.bf16.msra.mxu0 0
      %1040 = vmatpush.bf16.msra.mxu0 0
      %1041 = vmatpush.bf16.msra.mxu0 %v1006
      %1042 = vmatmul.bf16.gmra.mxu0 %v938
      %v1043 = vpop.f32.mrf.mxu0
      %v1044 = vadd.f32 0.0, %v1043
      %v1045 = vpop.f32.mrf.mxu0
      %1046 = vdwg.mxu0
      %v1047 = vadd.f32 %v988, %v1018
      %v1048 = vadd.f32 %v989, %v1031
      %v1049 = vadd.f32 %v990, %v1044
      %v1051 = vsel %vm257, %v927, 0
      %1053 = vmatpush.bf16.msra.mxu0 0
      %1054 = vmatpush.bf16.msra.mxu0 0
      %1055 = vmatpush.bf16.msra.mxu0 0
      %1056 = vmatpush.bf16.msra.mxu0 0
      %1057 = vmatpush.bf16.msra.mxu0 0
      %1058 = vmatpush.bf16.msra.mxu0 0
      %1059 = vmatpush.bf16.msra.mxu0 0
      %1060 = vmatpush.bf16.msra.mxu0 %v941
      %1061 = vmatmul.bf16.gmra.mxu0 %v1051
      %v1062 = vpop.f32.mrf.mxu0
      %v1063 = vadd.f32 0.0, %v1062
      %v1064 = vpop.f32.mrf.mxu0
      %1065 = vdwg.mxu0
      %1066 = vmatpush.bf16.msra.mxu0 0
      %1067 = vmatpush.bf16.msra.mxu0 0
      %1068 = vmatpush.bf16.msra.mxu0 0
      %1069 = vmatpush.bf16.msra.mxu0 0
      %1070 = vmatpush.bf16.msra.mxu0 0
      %1071 = vmatpush.bf16.msra.mxu0 0
      %1072 = vmatpush.bf16.msra.mxu0 0
      %1073 = vmatpush.bf16.msra.mxu0 %v944
      %1074 = vmatmul.bf16.gmra.mxu0 %v1051
      %v1075 = vpop.f32.mrf.mxu0
      %v1076 = vadd.f32 0.0, %v1075
      %v1077 = vpop.f32.mrf.mxu0
      %1078 = vdwg.mxu0
      %1079 = vmatpush.bf16.msra.mxu0 0
      %1080 = vmatpush.bf16.msra.mxu0 0
      %1081 = vmatpush.bf16.msra.mxu0 0
      %1082 = vmatpush.bf16.msra.mxu0 0
      %1083 = vmatpush.bf16.msra.mxu0 0
      %1084 = vmatpush.bf16.msra.mxu0 0
      %1085 = vmatpush.bf16.msra.mxu0 0
      %1086 = vmatpush.bf16.msra.mxu0 %v947
      %1087 = vmatmul.bf16.gmra.mxu0 %v1051
      %v1088 = vpop.f32.mrf.mxu0
      %v1089 = vadd.f32 0.0, %v1088
      %v1090 = vpop.f32.mrf.mxu0
      %1091 = vdwg.mxu0
      %v1092 = vadd.f32 %v1047, %v1063
      %v1093 = vadd.f32 %v1048, %v1076
      %v1094 = vadd.f32 %v1049, %v1089
      %s1095 = scalar_lea.vmem %s0, 20
      %v1096 = vld [vmem:[%s1095] sm:$0xf]
      %s1097 = scalar_lea.vmem %s1, 20
      %v1098 = vld [vmem:[%s1097] sm:$0xf]
      %1099 = vrot.lane.b32.xlu0 %v315, 108
      %v1100 = vpop.permute.xlu0 %1099
      %1101 = vrot.lane.b32.xlu0 %v316, 108
      %v1102 = vpop.permute.xlu0 %1101
      %1103 = vrot.lane.b32.xlu0 %v317, 108
      %v1104 = vpop.permute.xlu0 %1103
      %vm1105 = vcmask 883712
      %v1106 = vsel %vm1105, %v1100, %v1102
      %v1107 = vsel %vm1105, %v1102, %v1104
      %v1109 = vsel %vm257, %v1096, 0
      %v1112 = vsel %vm261, %v1106, 0
      %v1115 = vsel %vm261, %v1107, 0
      %v1118 = vsel %vm261, %v1104, 0
      %1120 = vmatpush.bf16.msra.mxu0 0
      %1121 = vmatpush.bf16.msra.mxu0 0
      %1122 = vmatpush.bf16.msra.mxu0 0
      %1123 = vmatpush.bf16.msra.mxu0 0
      %1124 = vmatpush.bf16.msra.mxu0 0
      %1125 = vmatpush.bf16.msra.mxu0 0
      %1126 = vmatpush.bf16.msra.mxu0 0
      %1127 = vmatpush.bf16.msra.mxu0 %v1112
      %1128 = vmatmul.bf16.gmra.mxu0 %v1109
      %v1129 = vpop.f32.mrf.mxu0
      %v1130 = vadd.f32 0.0, %v1129
      %v1131 = vpop.f32.mrf.mxu0
      %1132 = vdwg.mxu0
      %1133 = vmatpush.bf16.msra.mxu0 0
      %1134 = vmatpush.bf16.msra.mxu0 0
      %1135 = vmatpush.bf16.msra.mxu0 0
      %1136 = vmatpush.bf16.msra.mxu0 0
      %1137 = vmatpush.bf16.msra.mxu0 0
      %1138 = vmatpush.bf16.msra.mxu0 0
      %1139 = vmatpush.bf16.msra.mxu0 0
      %1140 = vmatpush.bf16.msra.mxu0 %v1115
      %1141 = vmatmul.bf16.gmra.mxu0 %v1109
      %v1142 = vpop.f32.mrf.mxu0
      %v1143 = vadd.f32 0.0, %v1142
      %v1144 = vpop.f32.mrf.mxu0
      %1145 = vdwg.mxu0
      %1146 = vmatpush.bf16.msra.mxu0 0
      %1147 = vmatpush.bf16.msra.mxu0 0
      %1148 = vmatpush.bf16.msra.mxu0 0
      %1149 = vmatpush.bf16.msra.mxu0 0
      %1150 = vmatpush.bf16.msra.mxu0 0
      %1151 = vmatpush.bf16.msra.mxu0 0
      %1152 = vmatpush.bf16.msra.mxu0 0
      %1153 = vmatpush.bf16.msra.mxu0 %v1118
      %1154 = vmatmul.bf16.gmra.mxu0 %v1109
      %v1155 = vpop.f32.mrf.mxu0
      %v1156 = vadd.f32 0.0, %v1155
      %v1157 = vpop.f32.mrf.mxu0
      %1158 = vdwg.mxu0
      %v1159 = vadd.f32 %v1092, %v1130
      %v1160 = vadd.f32 %v1093, %v1143
      %v1161 = vadd.f32 %v1094, %v1156
      %1162 = vrot.lane.b32.xlu0 %v254, 108
      %v1163 = vpop.permute.xlu0 %1162
      %1164 = vrot.lane.b32.xlu0 %v255, 108
      %v1165 = vpop.permute.xlu0 %1164
      %1166 = vrot.lane.b32.xlu0 %v256, 108
      %v1167 = vpop.permute.xlu0 %1166
      %v1168 = vsel %vm1105, %v1163, %v1165
      %v1169 = vsel %vm1105, %v1165, %v1167
      %v1171 = vsel %vm261, %v1168, 0
      %v1174 = vsel %vm261, %v1169, 0
      %v1177 = vsel %vm261, %v1167, 0
      %1179 = vmatpush.bf16.msra.mxu0 0
      %1180 = vmatpush.bf16.msra.mxu0 0
      %1181 = vmatpush.bf16.msra.mxu0 0
      %1182 = vmatpush.bf16.msra.mxu0 0
      %1183 = vmatpush.bf16.msra.mxu0 0
      %1184 = vmatpush.bf16.msra.mxu0 0
      %1185 = vmatpush.bf16.msra.mxu0 0
      %1186 = vmatpush.bf16.msra.mxu0 %v1171
      %1187 = vmatmul.bf16.gmra.mxu0 %v1109
      %v1188 = vpop.f32.mrf.mxu0
      %v1189 = vadd.f32 0.0, %v1188
      %v1190 = vpop.f32.mrf.mxu0
      %1191 = vdwg.mxu0
      %1192 = vmatpush.bf16.msra.mxu0 0
      %1193 = vmatpush.bf16.msra.mxu0 0
      %1194 = vmatpush.bf16.msra.mxu0 0
      %1195 = vmatpush.bf16.msra.mxu0 0
      %1196 = vmatpush.bf16.msra.mxu0 0
      %1197 = vmatpush.bf16.msra.mxu0 0
      %1198 = vmatpush.bf16.msra.mxu0 0
      %1199 = vmatpush.bf16.msra.mxu0 %v1174
      %1200 = vmatmul.bf16.gmra.mxu0 %v1109
      %v1201 = vpop.f32.mrf.mxu0
      %v1202 = vadd.f32 0.0, %v1201
      %v1203 = vpop.f32.mrf.mxu0
      %1204 = vdwg.mxu0
      %1205 = vmatpush.bf16.msra.mxu0 0
      %1206 = vmatpush.bf16.msra.mxu0 0
      %1207 = vmatpush.bf16.msra.mxu0 0
      %1208 = vmatpush.bf16.msra.mxu0 0
      %1209 = vmatpush.bf16.msra.mxu0 0
      %1210 = vmatpush.bf16.msra.mxu0 0
      %1211 = vmatpush.bf16.msra.mxu0 0
      %1212 = vmatpush.bf16.msra.mxu0 %v1177
      %1213 = vmatmul.bf16.gmra.mxu0 %v1109
      %v1214 = vpop.f32.mrf.mxu0
      %v1215 = vadd.f32 0.0, %v1214
      %v1216 = vpop.f32.mrf.mxu0
      %1217 = vdwg.mxu0
      %v1218 = vadd.f32 %v1159, %v1189
      %v1219 = vadd.f32 %v1160, %v1202
      %v1220 = vadd.f32 %v1161, %v1215
      %v1222 = vsel %vm257, %v1098, 0
      %1224 = vmatpush.bf16.msra.mxu0 0
      %1225 = vmatpush.bf16.msra.mxu0 0
      %1226 = vmatpush.bf16.msra.mxu0 0
      %1227 = vmatpush.bf16.msra.mxu0 0
      %1228 = vmatpush.bf16.msra.mxu0 0
      %1229 = vmatpush.bf16.msra.mxu0 0
      %1230 = vmatpush.bf16.msra.mxu0 0
      %1231 = vmatpush.bf16.msra.mxu0 %v1112
      %1232 = vmatmul.bf16.gmra.mxu0 %v1222
      %v1233 = vpop.f32.mrf.mxu0
      %v1234 = vadd.f32 0.0, %v1233
      %v1235 = vpop.f32.mrf.mxu0
      %1236 = vdwg.mxu0
      %1237 = vmatpush.bf16.msra.mxu0 0
      %1238 = vmatpush.bf16.msra.mxu0 0
      %1239 = vmatpush.bf16.msra.mxu0 0
      %1240 = vmatpush.bf16.msra.mxu0 0
      %1241 = vmatpush.bf16.msra.mxu0 0
      %1242 = vmatpush.bf16.msra.mxu0 0
      %1243 = vmatpush.bf16.msra.mxu0 0
      %1244 = vmatpush.bf16.msra.mxu0 %v1115
      %1245 = vmatmul.bf16.gmra.mxu0 %v1222
      %v1246 = vpop.f32.mrf.mxu0
      %v1247 = vadd.f32 0.0, %v1246
      %v1248 = vpop.f32.mrf.mxu0
      %1249 = vdwg.mxu0
      %1250 = vmatpush.bf16.msra.mxu0 0
      %1251 = vmatpush.bf16.msra.mxu0 0
      %1252 = vmatpush.bf16.msra.mxu0 0
      %1253 = vmatpush.bf16.msra.mxu0 0
      %1254 = vmatpush.bf16.msra.mxu0 0
      %1255 = vmatpush.bf16.msra.mxu0 0
      %1256 = vmatpush.bf16.msra.mxu0 0
      %1257 = vmatpush.bf16.msra.mxu0 %v1118
      %1258 = vmatmul.bf16.gmra.mxu0 %v1222
      %v1259 = vpop.f32.mrf.mxu0
      %v1260 = vadd.f32 0.0, %v1259
      %v1261 = vpop.f32.mrf.mxu0
      %1262 = vdwg.mxu0
      %v1263 = vadd.f32 %v1218, %v1234
      %v1264 = vadd.f32 %v1219, %v1247
      %v1265 = vadd.f32 %v1220, %v1260
      %s1266 = scalar_lea.vmem %s0, 24
      %v1267 = vld [vmem:[%s1266] sm:$0xf]
      %s1268 = scalar_lea.vmem %s1, 24
      %v1269 = vld [vmem:[%s1268] sm:$0xf]
      %1270 = vrot.lane.b32.xlu0 %v315, 92
      %v1271 = vpop.permute.xlu0 %1270
      %1272 = vrot.lane.b32.xlu0 %v316, 92
      %v1273 = vpop.permute.xlu0 %1272
      %1274 = vrot.lane.b32.xlu0 %v317, 92
      %v1275 = vpop.permute.xlu0 %1274
      %vm1276 = vcmask 752640
      %v1277 = vsel %vm1276, %v1271, %v1273
      %v1278 = vsel %vm1276, %v1273, %v1275
      %v1280 = vsel %vm257, %v1267, 0
      %v1283 = vsel %vm261, %v1277, 0
      %v1286 = vsel %vm261, %v1278, 0
      %v1289 = vsel %vm261, %v1275, 0
      %1291 = vmatpush.bf16.msra.mxu0 0
      %1292 = vmatpush.bf16.msra.mxu0 0
      %1293 = vmatpush.bf16.msra.mxu0 0
      %1294 = vmatpush.bf16.msra.mxu0 0
      %1295 = vmatpush.bf16.msra.mxu0 0
      %1296 = vmatpush.bf16.msra.mxu0 0
      %1297 = vmatpush.bf16.msra.mxu0 0
      %1298 = vmatpush.bf16.msra.mxu0 %v1283
      %1299 = vmatmul.bf16.gmra.mxu0 %v1280
      %v1300 = vpop.f32.mrf.mxu0
      %v1301 = vadd.f32 0.0, %v1300
      %v1302 = vpop.f32.mrf.mxu0
      %1303 = vdwg.mxu0
      %1304 = vmatpush.bf16.msra.mxu0 0
      %1305 = vmatpush.bf16.msra.mxu0 0
      %1306 = vmatpush.bf16.msra.mxu0 0
      %1307 = vmatpush.bf16.msra.mxu0 0
      %1308 = vmatpush.bf16.msra.mxu0 0
      %1309 = vmatpush.bf16.msra.mxu0 0
      %1310 = vmatpush.bf16.msra.mxu0 0
      %1311 = vmatpush.bf16.msra.mxu0 %v1286
      %1312 = vmatmul.bf16.gmra.mxu0 %v1280
      %v1313 = vpop.f32.mrf.mxu0
      %v1314 = vadd.f32 0.0, %v1313
      %v1315 = vpop.f32.mrf.mxu0
      %1316 = vdwg.mxu0
      %1317 = vmatpush.bf16.msra.mxu0 0
      %1318 = vmatpush.bf16.msra.mxu0 0
      %1319 = vmatpush.bf16.msra.mxu0 0
      %1320 = vmatpush.bf16.msra.mxu0 0
      %1321 = vmatpush.bf16.msra.mxu0 0
      %1322 = vmatpush.bf16.msra.mxu0 0
      %1323 = vmatpush.bf16.msra.mxu0 0
      %1324 = vmatpush.bf16.msra.mxu0 %v1289
      %1325 = vmatmul.bf16.gmra.mxu0 %v1280
      %v1326 = vpop.f32.mrf.mxu0
      %v1327 = vadd.f32 0.0, %v1326
      %v1328 = vpop.f32.mrf.mxu0
      %1329 = vdwg.mxu0
      %v1330 = vadd.f32 %v1263, %v1301
      %v1331 = vadd.f32 %v1264, %v1314
      %v1332 = vadd.f32 %v1265, %v1327
      %1333 = vrot.lane.b32.xlu0 %v254, 92
      %v1334 = vpop.permute.xlu0 %1333
      %1335 = vrot.lane.b32.xlu0 %v255, 92
      %v1336 = vpop.permute.xlu0 %1335
      %1337 = vrot.lane.b32.xlu0 %v256, 92
      %v1338 = vpop.permute.xlu0 %1337
      %v1339 = vsel %vm1276, %v1334, %v1336
      %v1340 = vsel %vm1276, %v1336, %v1338
      %v1342 = vsel %vm261, %v1339, 0
      %v1345 = vsel %vm261, %v1340, 0
      %v1348 = vsel %vm261, %v1338, 0
      %1350 = vmatpush.bf16.msra.mxu0 0
      %1351 = vmatpush.bf16.msra.mxu0 0
      %1352 = vmatpush.bf16.msra.mxu0 0
      %1353 = vmatpush.bf16.msra.mxu0 0
      %1354 = vmatpush.bf16.msra.mxu0 0
      %1355 = vmatpush.bf16.msra.mxu0 0
      %1356 = vmatpush.bf16.msra.mxu0 0
      %1357 = vmatpush.bf16.msra.mxu0 %v1342
      %1358 = vmatmul.bf16.gmra.mxu0 %v1280
      %v1359 = vpop.f32.mrf.mxu0
      %v1360 = vadd.f32 0.0, %v1359
      %v1361 = vpop.f32.mrf.mxu0
      %1362 = vdwg.mxu0
      %1363 = vmatpush.bf16.msra.mxu0 0
      %1364 = vmatpush.bf16.msra.mxu0 0
      %1365 = vmatpush.bf16.msra.mxu0 0
      %1366 = vmatpush.bf16.msra.mxu0 0
      %1367 = vmatpush.bf16.msra.mxu0 0
      %1368 = vmatpush.bf16.msra.mxu0 0
      %1369 = vmatpush.bf16.msra.mxu0 0
      %1370 = vmatpush.bf16.msra.mxu0 %v1345
      %1371 = vmatmul.bf16.gmra.mxu0 %v1280
      %v1372 = vpop.f32.mrf.mxu0
      %v1373 = vadd.f32 0.0, %v1372
      %v1374 = vpop.f32.mrf.mxu0
      %1375 = vdwg.mxu0
      %1376 = vmatpush.bf16.msra.mxu0 0
      %1377 = vmatpush.bf16.msra.mxu0 0
      %1378 = vmatpush.bf16.msra.mxu0 0
      %1379 = vmatpush.bf16.msra.mxu0 0
      %1380 = vmatpush.bf16.msra.mxu0 0
      %1381 = vmatpush.bf16.msra.mxu0 0
      %1382 = vmatpush.bf16.msra.mxu0 0
      %1383 = vmatpush.bf16.msra.mxu0 %v1348
      %1384 = vmatmul.bf16.gmra.mxu0 %v1280
      %v1385 = vpop.f32.mrf.mxu0
      %v1386 = vadd.f32 0.0, %v1385
      %v1387 = vpop.f32.mrf.mxu0
      %1388 = vdwg.mxu0
      %v1389 = vadd.f32 %v1330, %v1360
      %v1390 = vadd.f32 %v1331, %v1373
      %v1391 = vadd.f32 %v1332, %v1386
      %v1393 = vsel %vm257, %v1269, 0
      %1395 = vmatpush.bf16.msra.mxu0 0
      %1396 = vmatpush.bf16.msra.mxu0 0
      %1397 = vmatpush.bf16.msra.mxu0 0
      %1398 = vmatpush.bf16.msra.mxu0 0
      %1399 = vmatpush.bf16.msra.mxu0 0
      %1400 = vmatpush.bf16.msra.mxu0 0
      %1401 = vmatpush.bf16.msra.mxu0 0
      %1402 = vmatpush.bf16.msra.mxu0 %v1283
      %1403 = vmatmul.bf16.gmra.mxu0 %v1393
      %v1404 = vpop.f32.mrf.mxu0
      %v1405 = vadd.f32 0.0, %v1404
      %v1406 = vpop.f32.mrf.mxu0
      %1407 = vdwg.mxu0
      %1408 = vmatpush.bf16.msra.mxu0 0
      %1409 = vmatpush.bf16.msra.mxu0 0
      %1410 = vmatpush.bf16.msra.mxu0 0
      %1411 = vmatpush.bf16.msra.mxu0 0
      %1412 = vmatpush.bf16.msra.mxu0 0
      %1413 = vmatpush.bf16.msra.mxu0 0
      %1414 = vmatpush.bf16.msra.mxu0 0
      %1415 = vmatpush.bf16.msra.mxu0 %v1286
      %1416 = vmatmul.bf16.gmra.mxu0 %v1393
      %v1417 = vpop.f32.mrf.mxu0
      %v1418 = vadd.f32 0.0, %v1417
      %v1419 = vpop.f32.mrf.mxu0
      %1420 = vdwg.mxu0
      %1421 = vmatpush.bf16.msra.mxu0 0
      %1422 = vmatpush.bf16.msra.mxu0 0
      %1423 = vmatpush.bf16.msra.mxu0 0
      %1424 = vmatpush.bf16.msra.mxu0 0
      %1425 = vmatpush.bf16.msra.mxu0 0
      %1426 = vmatpush.bf16.msra.mxu0 0
      %1427 = vmatpush.bf16.msra.mxu0 0
      %1428 = vmatpush.bf16.msra.mxu0 %v1289
      %1429 = vmatmul.bf16.gmra.mxu0 %v1393
      %v1430 = vpop.f32.mrf.mxu0
      %v1431 = vadd.f32 0.0, %v1430
      %v1432 = vpop.f32.mrf.mxu0
      %1433 = vdwg.mxu0
      %v1434 = vadd.f32 %v1389, %v1405
      %v1435 = vadd.f32 %v1390, %v1418
      %v1436 = vadd.f32 %v1391, %v1431
      %s1437 = scalar_lea.vmem %s0, 28
      %v1438 = vld [vmem:[%s1437] sm:$0xf]
      %s1439 = scalar_lea.vmem %s1, 28
      %v1440 = vld [vmem:[%s1439] sm:$0xf]
      %1441 = vrot.lane.b32.xlu0 %v315, 91
      %v1442 = vpop.permute.xlu0 %1441
      %1443 = vrot.lane.b32.xlu0 %v316, 91
      %v1444 = vpop.permute.xlu0 %1443
      %1445 = vrot.lane.b32.xlu0 %v317, 91
      %v1446 = vpop.permute.xlu0 %1445
      %vm1447 = vcmask 744448
      %v1448 = vsel %vm1447, %v1442, %v1444
      %v1449 = vsel %vm1447, %v1444, %v1446
      %v1451 = vsel %vm257, %v1438, 0
      %v1454 = vsel %vm261, %v1448, 0
      %v1457 = vsel %vm261, %v1449, 0
      %v1460 = vsel %vm261, %v1446, 0
      %1462 = vmatpush.bf16.msra.mxu0 0
      %1463 = vmatpush.bf16.msra.mxu0 0
      %1464 = vmatpush.bf16.msra.mxu0 0
      %1465 = vmatpush.bf16.msra.mxu0 0
      %1466 = vmatpush.bf16.msra.mxu0 0
      %1467 = vmatpush.bf16.msra.mxu0 0
      %1468 = vmatpush.bf16.msra.mxu0 0
      %1469 = vmatpush.bf16.msra.mxu0 %v1454
      %1470 = vmatmul.bf16.gmra.mxu0 %v1451
      %v1471 = vpop.f32.mrf.mxu0
      %v1472 = vadd.f32 0.0, %v1471
      %v1473 = vpop.f32.mrf.mxu0
      %1474 = vdwg.mxu0
      %1475 = vmatpush.bf16.msra.mxu0 0
      %1476 = vmatpush.bf16.msra.mxu0 0
      %1477 = vmatpush.bf16.msra.mxu0 0
      %1478 = vmatpush.bf16.msra.mxu0 0
      %1479 = vmatpush.bf16.msra.mxu0 0
      %1480 = vmatpush.bf16.msra.mxu0 0
      %1481 = vmatpush.bf16.msra.mxu0 0
      %1482 = vmatpush.bf16.msra.mxu0 %v1457
      %1483 = vmatmul.bf16.gmra.mxu0 %v1451
      %v1484 = vpop.f32.mrf.mxu0
      %v1485 = vadd.f32 0.0, %v1484
      %v1486 = vpop.f32.mrf.mxu0
      %1487 = vdwg.mxu0
      %1488 = vmatpush.bf16.msra.mxu0 0
      %1489 = vmatpush.bf16.msra.mxu0 0
      %1490 = vmatpush.bf16.msra.mxu0 0
      %1491 = vmatpush.bf16.msra.mxu0 0
      %1492 = vmatpush.bf16.msra.mxu0 0
      %1493 = vmatpush.bf16.msra.mxu0 0
      %1494 = vmatpush.bf16.msra.mxu0 0
      %1495 = vmatpush.bf16.msra.mxu0 %v1460
      %1496 = vmatmul.bf16.gmra.mxu0 %v1451
      %v1497 = vpop.f32.mrf.mxu0
      %v1498 = vadd.f32 0.0, %v1497
      %v1499 = vpop.f32.mrf.mxu0
      %1500 = vdwg.mxu0
      %v1501 = vadd.f32 %v1434, %v1472
      %v1502 = vadd.f32 %v1435, %v1485
      %v1503 = vadd.f32 %v1436, %v1498
      %1504 = vrot.lane.b32.xlu0 %v254, 91
      %v1505 = vpop.permute.xlu0 %1504
      %1506 = vrot.lane.b32.xlu0 %v255, 91
      %v1507 = vpop.permute.xlu0 %1506
      %1508 = vrot.lane.b32.xlu0 %v256, 91
      %v1509 = vpop.permute.xlu0 %1508
      %v1510 = vsel %vm1447, %v1505, %v1507
      %v1511 = vsel %vm1447, %v1507, %v1509
      %v1513 = vsel %vm261, %v1510, 0
      %v1516 = vsel %vm261, %v1511, 0
      %v1519 = vsel %vm261, %v1509, 0
      %1521 = vmatpush.bf16.msra.mxu0 0
      %1522 = vmatpush.bf16.msra.mxu0 0
      %1523 = vmatpush.bf16.msra.mxu0 0
      %1524 = vmatpush.bf16.msra.mxu0 0
      %1525 = vmatpush.bf16.msra.mxu0 0
      %1526 = vmatpush.bf16.msra.mxu0 0
      %1527 = vmatpush.bf16.msra.mxu0 0
      %1528 = vmatpush.bf16.msra.mxu0 %v1513
      %1529 = vmatmul.bf16.gmra.mxu0 %v1451
      %v1530 = vpop.f32.mrf.mxu0
      %v1531 = vadd.f32 0.0, %v1530
      %v1532 = vpop.f32.mrf.mxu0
      %1533 = vdwg.mxu0
      %1534 = vmatpush.bf16.msra.mxu0 0
      %1535 = vmatpush.bf16.msra.mxu0 0
      %1536 = vmatpush.bf16.msra.mxu0 0
      %1537 = vmatpush.bf16.msra.mxu0 0
      %1538 = vmatpush.bf16.msra.mxu0 0
      %1539 = vmatpush.bf16.msra.mxu0 0
      %1540 = vmatpush.bf16.msra.mxu0 0
      %1541 = vmatpush.bf16.msra.mxu0 %v1516
      %1542 = vmatmul.bf16.gmra.mxu0 %v1451
      %v1543 = vpop.f32.mrf.mxu0
      %v1544 = vadd.f32 0.0, %v1543
      %v1545 = vpop.f32.mrf.mxu0
      %1546 = vdwg.mxu0
      %1547 = vmatpush.bf16.msra.mxu0 0
      %1548 = vmatpush.bf16.msra.mxu0 0
      %1549 = vmatpush.bf16.msra.mxu0 0
      %1550 = vmatpush.bf16.msra.mxu0 0
      %1551 = vmatpush.bf16.msra.mxu0 0
      %1552 = vmatpush.bf16.msra.mxu0 0
      %1553 = vmatpush.bf16.msra.mxu0 0
      %1554 = vmatpush.bf16.msra.mxu0 %v1519
      %1555 = vmatmul.bf16.gmra.mxu0 %v1451
      %v1556 = vpop.f32.mrf.mxu0
      %v1557 = vadd.f32 0.0, %v1556
      %v1558 = vpop.f32.mrf.mxu0
      %1559 = vdwg.mxu0
      %v1560 = vadd.f32 %v1501, %v1531
      %v1561 = vadd.f32 %v1502, %v1544
      %v1562 = vadd.f32 %v1503, %v1557
      %v1564 = vsel %vm257, %v1440, 0
      %1566 = vmatpush.bf16.msra.mxu0 0
      %1567 = vmatpush.bf16.msra.mxu0 0
      %1568 = vmatpush.bf16.msra.mxu0 0
      %1569 = vmatpush.bf16.msra.mxu0 0
      %1570 = vmatpush.bf16.msra.mxu0 0
      %1571 = vmatpush.bf16.msra.mxu0 0
      %1572 = vmatpush.bf16.msra.mxu0 0
      %1573 = vmatpush.bf16.msra.mxu0 %v1454
      %1574 = vmatmul.bf16.gmra.mxu0 %v1564
      %v1575 = vpop.f32.mrf.mxu0
      %v1576 = vadd.f32 0.0, %v1575
      %v1577 = vpop.f32.mrf.mxu0
      %1578 = vdwg.mxu0
      %1579 = vmatpush.bf16.msra.mxu0 0
      %1580 = vmatpush.bf16.msra.mxu0 0
      %1581 = vmatpush.bf16.msra.mxu0 0
      %1582 = vmatpush.bf16.msra.mxu0 0
      %1583 = vmatpush.bf16.msra.mxu0 0
      %1584 = vmatpush.bf16.msra.mxu0 0
      %1585 = vmatpush.bf16.msra.mxu0 0
      %1586 = vmatpush.bf16.msra.mxu0 %v1457
      %1587 = vmatmul.bf16.gmra.mxu0 %v1564
      %v1588 = vpop.f32.mrf.mxu0
      %v1589 = vadd.f32 0.0, %v1588
      %v1590 = vpop.f32.mrf.mxu0
      %1591 = vdwg.mxu0
      %1592 = vmatpush.bf16.msra.mxu0 0
      %1593 = vmatpush.bf16.msra.mxu0 0
      %1594 = vmatpush.bf16.msra.mxu0 0
      %1595 = vmatpush.bf16.msra.mxu0 0
      %1596 = vmatpush.bf16.msra.mxu0 0
      %1597 = vmatpush.bf16.msra.mxu0 0
      %1598 = vmatpush.bf16.msra.mxu0 0
      %1599 = vmatpush.bf16.msra.mxu0 %v1460
      %1600 = vmatmul.bf16.gmra.mxu0 %v1564
      %v1601 = vpop.f32.mrf.mxu0
      %v1602 = vadd.f32 0.0, %v1601
      %v1603 = vpop.f32.mrf.mxu0
      %1604 = vdwg.mxu0
      %v1605 = vadd.f32 %v1560, %v1576
      %v1606 = vadd.f32 %v1561, %v1589
      %v1607 = vadd.f32 %v1562, %v1602
      %s1608 = scalar_lea.vmem %s0, 32
      %v1609 = vld [vmem:[%s1608] sm:$0xf]
      %s1610 = scalar_lea.vmem %s1, 32
      %v1611 = vld [vmem:[%s1610] sm:$0xf]
      %1612 = vrot.lane.b32.xlu0 %v315, 90
      %v1613 = vpop.permute.xlu0 %1612
      %1614 = vrot.lane.b32.xlu0 %v316, 90
      %v1615 = vpop.permute.xlu0 %1614
      %1616 = vrot.lane.b32.xlu0 %v317, 90
      %v1617 = vpop.permute.xlu0 %1616
      %vm1618 = vcmask 736256
      %v1619 = vsel %vm1618, %v1613, %v1615
      %v1620 = vsel %vm1618, %v1615, %v1617
      %v1622 = vsel %vm257, %v1609, 0
      %v1625 = vsel %vm261, %v1619, 0
      %v1628 = vsel %vm261, %v1620, 0
      %v1631 = vsel %vm261, %v1617, 0
      %1633 = vmatpush.bf16.msra.mxu0 0
      %1634 = vmatpush.bf16.msra.mxu0 0
      %1635 = vmatpush.bf16.msra.mxu0 0
      %1636 = vmatpush.bf16.msra.mxu0 0
      %1637 = vmatpush.bf16.msra.mxu0 0
      %1638 = vmatpush.bf16.msra.mxu0 0
      %1639 = vmatpush.bf16.msra.mxu0 0
      %1640 = vmatpush.bf16.msra.mxu0 %v1625
      %1641 = vmatmul.bf16.gmra.mxu0 %v1622
      %v1642 = vpop.f32.mrf.mxu0
      %v1643 = vadd.f32 0.0, %v1642
      %v1644 = vpop.f32.mrf.mxu0
      %1645 = vdwg.mxu0
      %1646 = vmatpush.bf16.msra.mxu0 0
      %1647 = vmatpush.bf16.msra.mxu0 0
      %1648 = vmatpush.bf16.msra.mxu0 0
      %1649 = vmatpush.bf16.msra.mxu0 0
      %1650 = vmatpush.bf16.msra.mxu0 0
      %1651 = vmatpush.bf16.msra.mxu0 0
      %1652 = vmatpush.bf16.msra.mxu0 0
      %1653 = vmatpush.bf16.msra.mxu0 %v1628
      %1654 = vmatmul.bf16.gmra.mxu0 %v1622
      %v1655 = vpop.f32.mrf.mxu0
      %v1656 = vadd.f32 0.0, %v1655
      %v1657 = vpop.f32.mrf.mxu0
      %1658 = vdwg.mxu0
      %1659 = vmatpush.bf16.msra.mxu0 0
      %1660 = vmatpush.bf16.msra.mxu0 0
      %1661 = vmatpush.bf16.msra.mxu0 0
      %1662 = vmatpush.bf16.msra.mxu0 0
      %1663 = vmatpush.bf16.msra.mxu0 0
      %1664 = vmatpush.bf16.msra.mxu0 0
      %1665 = vmatpush.bf16.msra.mxu0 0
      %1666 = vmatpush.bf16.msra.mxu0 %v1631
      %1667 = vmatmul.bf16.gmra.mxu0 %v1622
      %v1668 = vpop.f32.mrf.mxu0
      %v1669 = vadd.f32 0.0, %v1668
      %v1670 = vpop.f32.mrf.mxu0
      %1671 = vdwg.mxu0
      %v1672 = vadd.f32 %v1605, %v1643
      %v1673 = vadd.f32 %v1606, %v1656
      %v1674 = vadd.f32 %v1607, %v1669
      %1675 = vrot.lane.b32.xlu0 %v254, 90
      %v1676 = vpop.permute.xlu0 %1675
      %1677 = vrot.lane.b32.xlu0 %v255, 90
      %v1678 = vpop.permute.xlu0 %1677
      %1679 = vrot.lane.b32.xlu0 %v256, 90
      %v1680 = vpop.permute.xlu0 %1679
      %v1681 = vsel %vm1618, %v1676, %v1678
      %v1682 = vsel %vm1618, %v1678, %v1680
      %v1684 = vsel %vm261, %v1681, 0
      %v1687 = vsel %vm261, %v1682, 0
      %v1690 = vsel %vm261, %v1680, 0
      %1692 = vmatpush.bf16.msra.mxu0 0
      %1693 = vmatpush.bf16.msra.mxu0 0
      %1694 = vmatpush.bf16.msra.mxu0 0
      %1695 = vmatpush.bf16.msra.mxu0 0
      %1696 = vmatpush.bf16.msra.mxu0 0
      %1697 = vmatpush.bf16.msra.mxu0 0
      %1698 = vmatpush.bf16.msra.mxu0 0
      %1699 = vmatpush.bf16.msra.mxu0 %v1684
      %1700 = vmatmul.bf16.gmra.mxu0 %v1622
      %v1701 = vpop.f32.mrf.mxu0
      %v1702 = vadd.f32 0.0, %v1701
      %v1703 = vpop.f32.mrf.mxu0
      %1704 = vdwg.mxu0
      %1705 = vmatpush.bf16.msra.mxu0 0
      %1706 = vmatpush.bf16.msra.mxu0 0
      %1707 = vmatpush.bf16.msra.mxu0 0
      %1708 = vmatpush.bf16.msra.mxu0 0
      %1709 = vmatpush.bf16.msra.mxu0 0
      %1710 = vmatpush.bf16.msra.mxu0 0
      %1711 = vmatpush.bf16.msra.mxu0 0
      %1712 = vmatpush.bf16.msra.mxu0 %v1687
      %1713 = vmatmul.bf16.gmra.mxu0 %v1622
      %v1714 = vpop.f32.mrf.mxu0
      %v1715 = vadd.f32 0.0, %v1714
      %v1716 = vpop.f32.mrf.mxu0
      %1717 = vdwg.mxu0
      %1718 = vmatpush.bf16.msra.mxu0 0
      %1719 = vmatpush.bf16.msra.mxu0 0
      %1720 = vmatpush.bf16.msra.mxu0 0
      %1721 = vmatpush.bf16.msra.mxu0 0
      %1722 = vmatpush.bf16.msra.mxu0 0
      %1723 = vmatpush.bf16.msra.mxu0 0
      %1724 = vmatpush.bf16.msra.mxu0 0
      %1725 = vmatpush.bf16.msra.mxu0 %v1690
      %1726 = vmatmul.bf16.gmra.mxu0 %v1622
      %v1727 = vpop.f32.mrf.mxu0
      %v1728 = vadd.f32 0.0, %v1727
      %v1729 = vpop.f32.mrf.mxu0
      %1730 = vdwg.mxu0
      %v1731 = vadd.f32 %v1672, %v1702
      %v1732 = vadd.f32 %v1673, %v1715
      %v1733 = vadd.f32 %v1674, %v1728
      %v1735 = vsel %vm257, %v1611, 0
      %1737 = vmatpush.bf16.msra.mxu0 0
      %1738 = vmatpush.bf16.msra.mxu0 0
      %1739 = vmatpush.bf16.msra.mxu0 0
      %1740 = vmatpush.bf16.msra.mxu0 0
      %1741 = vmatpush.bf16.msra.mxu0 0
      %1742 = vmatpush.bf16.msra.mxu0 0
      %1743 = vmatpush.bf16.msra.mxu0 0
      %1744 = vmatpush.bf16.msra.mxu0 %v1625
      %1745 = vmatmul.bf16.gmra.mxu0 %v1735
      %v1746 = vpop.f32.mrf.mxu0
      %v1747 = vadd.f32 0.0, %v1746
      %v1748 = vpop.f32.mrf.mxu0
      %1749 = vdwg.mxu0
      %1750 = vmatpush.bf16.msra.mxu0 0
      %1751 = vmatpush.bf16.msra.mxu0 0
      %1752 = vmatpush.bf16.msra.mxu0 0
      %1753 = vmatpush.bf16.msra.mxu0 0
      %1754 = vmatpush.bf16.msra.mxu0 0
      %1755 = vmatpush.bf16.msra.mxu0 0
      %1756 = vmatpush.bf16.msra.mxu0 0
      %1757 = vmatpush.bf16.msra.mxu0 %v1628
      %1758 = vmatmul.bf16.gmra.mxu0 %v1735
      %v1759 = vpop.f32.mrf.mxu0
      %v1760 = vadd.f32 0.0, %v1759
      %v1761 = vpop.f32.mrf.mxu0
      %1762 = vdwg.mxu0
      %1763 = vmatpush.bf16.msra.mxu0 0
      %1764 = vmatpush.bf16.msra.mxu0 0
      %1765 = vmatpush.bf16.msra.mxu0 0
      %1766 = vmatpush.bf16.msra.mxu0 0
      %1767 = vmatpush.bf16.msra.mxu0 0
      %1768 = vmatpush.bf16.msra.mxu0 0
      %1769 = vmatpush.bf16.msra.mxu0 0
      %1770 = vmatpush.bf16.msra.mxu0 %v1631
      %1771 = vmatmul.bf16.gmra.mxu0 %v1735
      %v1772 = vpop.f32.mrf.mxu0
      %v1773 = vadd.f32 0.0, %v1772
      %v1774 = vpop.f32.mrf.mxu0
      %1775 = vdwg.mxu0
      %v1776 = vadd.f32 %v1731, %v1747
      %v1777 = vadd.f32 %v1732, %v1760
      %v1778 = vadd.f32 %v1733, %v1773
      %1779 = vst [vmem:[%s206] sm:$0xff] %v1776
      %1780 = vst [vmem:[%s206 + $0x8] sm:$0xff] %v1777
      %vm1781 = vcmask 261120
      %1782 = vst.msk [vmem:[%s206 + $0x10] sm:$0xff] %vm1781, %v1778
      %p1783 = scmp.lt.s32.totalorder %s18, 1
      %s1784 = scalar_select %p1783, %s18, 1
      %p1785 = scmp.lt.s32.totalorder %s19, 0
      %s1786 = scalar_select %p1785, %s19, 0
      %s1787 = smul.addr %s1786, 3
      %s1788 = smul.addr %s1784, 3
      %s1789 = sadd.s32 %s1787, %s1788
      %s1790 = smul.addr %s1789, 8
      %s1791 = scalar_lea.vmem %s3, %s1790
      // Predicated region
      $region33: #{_lambda_.1} parent=31 // pred_check
        %p1792 = pneg %p116
      $region34: #{_lambda_.1} parent=31 // pred_check_branch
        %1794 = sbr.rel (%p1792) target = $region36
      $region35: #{_lambda_.1} parent=31 // pred_region
        _
      $region36: #{_lambda_.1} parent=31 // pred_fallthru
        _
    $region32: #{_lambda_.1} parent=5 // pred_fallthru
      _
    %p1795 = scmp.le.s32.totalorder 2, %s9
    // Predicated region
    $region37: #{_lambda_.1} parent=5 // pred_check
      %p1796 = pneg %p1795
    $region38: #{_lambda_.1} parent=5 // pred_check_branch
      %1798 = sbr.rel (%p1796) target = $region40
    $region39: #{_lambda_.1} parent=5 // pred_region
      %s1799 = ssub.s32 %s9, 2
      // Predicated region
      $region41: #{_lambda_.1} parent=39 // pred_check
        %p1800 = pneg %p122
      $region42: #{_lambda_.1} parent=39 // pred_check_branch
        %1802 = sbr.rel (%p1800) target = $region44
      $region43: #{_lambda_.1} parent=39 // pred_region
        %p1803 = scmp.lt.s32.totalorder %s20, 1
        %s1804 = scalar_select %p1803, %s20, 1
        %p1805 = scmp.lt.s32.totalorder %s21, 0
        %s1806 = scalar_select %p1805, %s21, 0
        %s1807 = smul.addr %s1806, 3
        %s1808 = smul.addr %s1804, 3
        %s1809 = sadd.s32 %s1807, %s1808
        %s1810 = smul.addr %s1809, 8
        %s1811 = scalar_lea.vmem %s3, %s1810
      $region44: #{_lambda_.1} parent=39 // pred_fallthru
        _
    $region40: #{_lambda_.1} parent=5 // pred_fallthru
      _
  $region6: #{_lambda_.1} parent=0 // loop_footer
    %s13 = sadd.s32 1, %s9
  $region7: #{_lambda_.1} parent=0 // loop_footer_branch
    %8 = sbr.rel target = $region3
  $region8: #{_lambda_.1} parent=0 // loop_exit
    _

</llo_original>
